<compile_context>
chip_gen: v5e
topology: v5e:2x2
jax: 0.10.0
libtpu: 0.0.40
codegen_flags: <defaults>
</compile_context>

<pallas_src>
import functools

import jax
import jax.numpy as jnp
from jax.experimental import pallas as pl
from jax.experimental.pallas import tpu as pltpu

# ---------------- configuration (small synthetic shapes) ----------------
N, C, D, H, W = 2, 32, 8, 8, 8   # batch, channels, depth, height, width
L = 3                            # number of (base_layer, combiner_conv) pairs
TM = 512                         # voxels (lanes) per grid step; V % TM == 0
# Matmul operand dtype.  jnp.bfloat16 roughly doubles MXU throughput on
# v6e/v7x (f32 accumulation kept), but requires relaxing the allclose
# tolerance to ~1e-2; kept at f32 here so the strict correctness check holds
# on all generations (v5e VPU/EUP have no bf16 path anyway).
MXU_DTYPE = jnp.float32


# ---------------- Pallas kernel ----------------
def dense_cascade_kernel(x_ref, wb_ref, bb_ref, wc_ref, bc_ref, o_ref,
                         casc_ref, *, n_layers, c):
    """One voxel tile of the full dense-cascade block (channels on sublanes).

    x_ref   : (C, TM)               input voxels, channels-major
    wb_ref  : (L, C, C)             base-layer 1x1x1 weights, [l, out, in]
    bb_ref  : (L, C, 1)             base-layer biases
    wc_ref  : (L, C, (L+1)*C)       combiner weights, [l, out, in]; columns
                                    >= (l+2)*C are zero padding (never read)
    bc_ref  : (L, C, 1)             combiner biases
    o_ref   : (C, TM)               output voxels
    casc_ref: ((L+1)*C, TM) VMEM    growing channel cascade (scratch)
    """
    x = x_ref[...].astype(jnp.float32)
    casc_ref[0:c, :] = x            # cascade starts as the input chunk
    u = x                           # x_unit_l
    y = x
    for l in range(n_layers):
        # ---- base layer: pointwise conv (C -> C) + ReLU ----
        yu = jnp.dot(wb_ref[l].astype(MXU_DTYPE), u.astype(MXU_DTYPE),
                     preferred_element_type=jnp.float32) + bb_ref[l]
        yu = jnp.maximum(yu, 0.0)
        casc_ref[(l + 1) * c:(l + 2) * c, :] = yu   # torch.cat(..., dim=1)

        # ---- combiner: single fused dot over the valid cascade prefix ----
        kw = (l + 2) * c                            # true cascade width
        y = jnp.dot(wc_ref[l][:, 0:kw].astype(MXU_DTYPE),
                    casc_ref[0:kw, :].astype(MXU_DTYPE),
                    preferred_element_type=jnp.float32) + bc_ref[l]
        u = y
    o_ref[...] = y.astype(o_ref.dtype)              # lane-dense (C, TM) store


# ---------------- wrapper ----------------
def dense_cascade_block3d(x, wbT, bb, wcT, bc):
    n, c, d, h, w = x.shape
    v = n * d * h * w
    assert v % TM == 0
    n_layers = wbT.shape[0]
    max_casc = (n_layers + 1) * c

    # NCDHW -> (C, V): channels on sublanes, voxels on lanes
    x2 = jnp.transpose(x, (1, 0, 2, 3, 4)).reshape(c, v)

    kern = functools.partial(dense_cascade_kernel, n_layers=n_layers, c=c)
    out2 = pl.pallas_call(
        kern,
        out_shape=jax.ShapeDtypeStruct((c, v), x.dtype),
        grid_spec=pltpu.PrefetchScalarGridSpec(
            num_scalar_prefetch=0,
            grid=(v // TM,),
            in_specs=[
                pl.BlockSpec((c, TM), lambda i: (0, i)),
                # weights/biases: constant index maps -> stay resident in VMEM
                pl.BlockSpec((n_layers, c, c), lambda i: (0, 0, 0)),
                pl.BlockSpec((n_layers, c, 1), lambda i: (0, 0, 0)),
                pl.BlockSpec((n_layers, c, max_casc), lambda i: (0, 0, 0)),
                pl.BlockSpec((n_layers, c, 1), lambda i: (0, 0, 0)),
            ],
            out_specs=pl.BlockSpec((c, TM), lambda i: (0, i)),
            scratch_shapes=[pltpu.VMEM((max_casc, TM), jnp.float32)],
        ),
        compiler_params=pltpu.CompilerParams(
            dimension_semantics=("parallel",)),   # even grid -> both v7x TCs busy
    )(x2, wbT, bb, wcT, bc)

    # (C, V) -> NCDHW
    return out2.reshape(c, n, d, h, w).transpose(1, 0, 2, 3, 4)


# ---------------- pure-JAX reference (for correctness check) ----------------
def reference(x, wbT, bb, wcT, bc):
    n, c, d, h, w = x.shape
    x2 = jnp.transpose(x, (1, 0, 2, 3, 4)).reshape(c, -1).astype(jnp.float32)
    u = x2
    casc = x2
    y = x2
    for l in range(wbT.shape[0]):
        yu = jnp.maximum(wbT[l] @ u + bb[l], 0.0)
        casc = jnp.concatenate([casc, yu], axis=0)
        y = wcT[l][:, : casc.shape[0]] @ casc + bc[l]
        u = y
    return y.reshape(c, n, d, h, w).transpose(1, 0, 2, 3, 4)


# ---------------- deterministic parameter construction ----------------
def make_params(key, n_layers, c):
    wbT, bb, wcT, bc = [], [], [], []
    keys = jax.random.split(key, 4 * n_layers)
    ki = iter(keys)
    for l in range(n_layers):
        wbT.append(jax.random.normal(next(ki), (c, c), jnp.float32) / jnp.sqrt(c))
        bb.append(jax.random.normal(next(ki), (c, 1), jnp.float32) * 0.01)
        in_c = (l + 2) * c                       # cascade width seen by combiner l
        w_l = jax.random.normal(next(ki), (c, in_c), jnp.float32) / jnp.sqrt(in_c)
        w_full = jnp.zeros((c, (n_layers + 1) * c), jnp.float32).at[:, :in_c].set(w_l)
        wcT.append(w_full)
        bc.append(jax.random.normal(next(ki), (c, 1), jnp.float32) * 0.01)
    return (jnp.stack(wbT), jnp.stack(bb), jnp.stack(wcT), jnp.stack(bc))


if __name__ == "__main__":
    key = jax.random.PRNGKey(0)
    k_x, k_p = jax.random.split(key)
    x = jax.random.normal(k_x, (N, C, D, H, W), jnp.float32)
    wbT, bb, wcT, bc = make_params(k_p, L, C)

    out = dense_cascade_block3d(x, wbT, bb, wcT, bc)
    out = jax.block_until_ready(out)

    ref = jax.block_until_ready(reference(x, wbT, bb, wcT, bc))
    assert out.shape == (N, C, D, H, W)
    assert jnp.allclose(out, ref, atol=1e-3, rtol=1e-3), "mismatch vs reference"

    print("KERNEL_OK")
</pallas_src>

<mosaic_0001>
module attributes {stable_mosaic.version = 11 : i64} {
  func.func @dense_cascade_kernel(%arg0: i32, %arg1: memref<32x512xf32, #tpu.memory_space<vmem>>, %arg2: memref<3x32x32xf32, #tpu.memory_space<vmem>>, %arg3: memref<3x32x1xf32, #tpu.memory_space<vmem>>, %arg4: memref<3x32x128xf32, #tpu.memory_space<vmem>>, %arg5: memref<3x32x1xf32, #tpu.memory_space<vmem>>, %arg6: memref<32x512xf32, #tpu.memory_space<vmem>>, %arg7: memref<128x512xf32, #tpu.memory_space<vmem>>) attributes {dimension_semantics = [#tpu.dimension_semantics<parallel>], iteration_bounds = array<i64: 2>, scalar_prefetch = 0 : i64, scratch_operands = 1 : i64, tpu.core_type = #tpu.core_type<tc>, window_params = [{transform_indices = @transform_0, window_bounds = array<i64: 32, 512>}, {pipeline_mode = #tpu.pipeline_mode<synchronous>, transform_indices = @transform_1, window_bounds = array<i64: 3, 32, 32>}, {pipeline_mode = #tpu.pipeline_mode<synchronous>, transform_indices = @transform_2, window_bounds = array<i64: 3, 32, 1>}, {pipeline_mode = #tpu.pipeline_mode<synchronous>, transform_indices = @transform_3, window_bounds = array<i64: 3, 32, 128>}, {pipeline_mode = #tpu.pipeline_mode<synchronous>, transform_indices = @transform_4, window_bounds = array<i64: 3, 32, 1>}, {transform_indices = @transform_5, window_bounds = array<i64: 32, 512>}]} {
    %c0 = arith.constant 0 : index
    %c0_0 = arith.constant 0 : index
    %0 = vector.load %arg1[%c0, %c0_0] : memref<32x512xf32, #tpu.memory_space<vmem>>, vector<32x512xf32>
    %c0_1 = arith.constant 0 : index
    %c0_2 = arith.constant 0 : index
    %1 = vector.load %arg7[%c0_1, %c0_2] : memref<128x512xf32, #tpu.memory_space<vmem>>, vector<32x512xf32>
    tpu.vector_store %arg7[%c0_1, %c0_2], %0 {strides = array<i32>} : memref<128x512xf32, #tpu.memory_space<vmem>>, vector<32x512xf32>,
    %c0_3 = arith.constant 0 : index
    %c0_4 = arith.constant 0 : index
    %c0_5 = arith.constant 0 : index
    %2 = vector.load %arg2[%c0_3, %c0_4, %c0_5] : memref<3x32x32xf32, #tpu.memory_space<vmem>>, vector<1x32x32xf32>
    %3 = vector.shape_cast %2 : vector<1x32x32xf32> to vector<32x32xf32>
    %cst = arith.constant dense<0.000000e+00> : vector<32x512xf32>
    %4 = tpu.matmul %3, %0, %cst {dimension_numbers = #tpu.dot_dimension_numbers<[1], [0], [0], [1], [0, 0, 1, 1], [], []>} : vector<32x32xf32>, vector<32x512xf32>, vector<32x512xf32> -> vector<32x512xf32>
    %c0_6 = arith.constant 0 : index
    %c0_7 = arith.constant 0 : index
    %c0_8 = arith.constant 0 : index
    %5 = vector.load %arg3[%c0_6, %c0_7, %c0_8] : memref<3x32x1xf32, #tpu.memory_space<vmem>>, vector<1x32x1xf32>
    %6 = vector.shape_cast %5 : vector<1x32x1xf32> to vector<32x1xf32>
    %7 = vector.broadcast %6 : vector<32x1xf32> to vector<32x512xf32>
    %8 = arith.addf %4, %7 : vector<32x512xf32>
    %cst_9 = arith.constant 0.000000e+00 : f32
    %9 = vector.broadcast %cst_9 : f32 to vector<32x512xf32>
    %10 = arith.maximumf %8, %9 : vector<32x512xf32>
    %c32 = arith.constant 32 : index
    %c0_10 = arith.constant 0 : index
    %11 = vector.load %arg7[%c32, %c0_10] : memref<128x512xf32, #tpu.memory_space<vmem>>, vector<32x512xf32>
    tpu.vector_store %arg7[%c32, %c0_10], %10 {strides = array<i32>} : memref<128x512xf32, #tpu.memory_space<vmem>>, vector<32x512xf32>,
    %c0_11 = arith.constant 0 : index
    %c0_12 = arith.constant 0 : index
    %c0_13 = arith.constant 0 : index
    %12 = vector.load %arg4[%c0_11, %c0_12, %c0_13] : memref<3x32x128xf32, #tpu.memory_space<vmem>>, vector<1x32x128xf32>
    %13 = vector.shape_cast %12 : vector<1x32x128xf32> to vector<32x128xf32>
    %14 = vector.extract_strided_slice %13 {offsets = [0, 0], sizes = [32, 64], strides = [1, 1]} : vector<32x128xf32> to vector<32x64xf32>
    %c0_14 = arith.constant 0 : index
    %c0_15 = arith.constant 0 : index
    %15 = vector.load %arg7[%c0_14, %c0_15] : memref<128x512xf32, #tpu.memory_space<vmem>>, vector<64x512xf32>
    %cst_16 = arith.constant dense<0.000000e+00> : vector<32x512xf32>
    %16 = tpu.matmul %14, %15, %cst_16 {dimension_numbers = #tpu.dot_dimension_numbers<[1], [0], [0], [1], [0, 0, 1, 1], [], []>} : vector<32x64xf32>, vector<64x512xf32>, vector<32x512xf32> -> vector<32x512xf32>
    %c0_17 = arith.constant 0 : index
    %c0_18 = arith.constant 0 : index
    %c0_19 = arith.constant 0 : index
    %17 = vector.load %arg5[%c0_17, %c0_18, %c0_19] : memref<3x32x1xf32, #tpu.memory_space<vmem>>, vector<1x32x1xf32>
    %18 = vector.shape_cast %17 : vector<1x32x1xf32> to vector<32x1xf32>
    %19 = vector.broadcast %18 : vector<32x1xf32> to vector<32x512xf32>
    %20 = arith.addf %16, %19 : vector<32x512xf32>
    %c1 = arith.constant 1 : index
    %c0_20 = arith.constant 0 : index
    %c0_21 = arith.constant 0 : index
    %21 = vector.load %arg2[%c1, %c0_20, %c0_21] : memref<3x32x32xf32, #tpu.memory_space<vmem>>, vector<1x32x32xf32>
    %22 = vector.shape_cast %21 : vector<1x32x32xf32> to vector<32x32xf32>
    %cst_22 = arith.constant dense<0.000000e+00> : vector<32x512xf32>
    %23 = tpu.matmul %22, %20, %cst_22 {dimension_numbers = #tpu.dot_dimension_numbers<[1], [0], [0], [1], [0, 0, 1, 1], [], []>} : vector<32x32xf32>, vector<32x512xf32>, vector<32x512xf32> -> vector<32x512xf32>
    %c1_23 = arith.constant 1 : index
    %c0_24 = arith.constant 0 : index
    %c0_25 = arith.constant 0 : index
    %24 = vector.load %arg3[%c1_23, %c0_24, %c0_25] : memref<3x32x1xf32, #tpu.memory_space<vmem>>, vector<1x32x1xf32>
    %25 = vector.shape_cast %24 : vector<1x32x1xf32> to vector<32x1xf32>
    %26 = vector.broadcast %25 : vector<32x1xf32> to vector<32x512xf32>
    %27 = arith.addf %23, %26 : vector<32x512xf32>
    %cst_26 = arith.constant 0.000000e+00 : f32
    %28 = vector.broadcast %cst_26 : f32 to vector<32x512xf32>
    %29 = arith.maximumf %27, %28 : vector<32x512xf32>
    %c64 = arith.constant 64 : index
    %c0_27 = arith.constant 0 : index
    %30 = vector.load %arg7[%c64, %c0_27] : memref<128x512xf32, #tpu.memory_space<vmem>>, vector<32x512xf32>
    tpu.vector_store %arg7[%c64, %c0_27], %29 {strides = array<i32>} : memref<128x512xf32, #tpu.memory_space<vmem>>, vector<32x512xf32>,
    %c1_28 = arith.constant 1 : index
    %c0_29 = arith.constant 0 : index
    %c0_30 = arith.constant 0 : index
    %31 = vector.load %arg4[%c1_28, %c0_29, %c0_30] : memref<3x32x128xf32, #tpu.memory_space<vmem>>, vector<1x32x128xf32>
    %32 = vector.shape_cast %31 : vector<1x32x128xf32> to vector<32x128xf32>
    %33 = vector.extract_strided_slice %32 {offsets = [0, 0], sizes = [32, 96], strides = [1, 1]} : vector<32x128xf32> to vector<32x96xf32>
    %c0_31 = arith.constant 0 : index
    %c0_32 = arith.constant 0 : index
    %34 = vector.load %arg7[%c0_31, %c0_32] : memref<128x512xf32, #tpu.memory_space<vmem>>, vector<96x512xf32>
    %cst_33 = arith.constant dense<0.000000e+00> : vector<32x512xf32>
    %35 = tpu.matmul %33, %34, %cst_33 {dimension_numbers = #tpu.dot_dimension_numbers<[1], [0], [0], [1], [0, 0, 1, 1], [], []>} : vector<32x96xf32>, vector<96x512xf32>, vector<32x512xf32> -> vector<32x512xf32>
    %c1_34 = arith.constant 1 : index
    %c0_35 = arith.constant 0 : index
    %c0_36 = arith.constant 0 : index
    %36 = vector.load %arg5[%c1_34, %c0_35, %c0_36] : memref<3x32x1xf32, #tpu.memory_space<vmem>>, vector<1x32x1xf32>
    %37 = vector.shape_cast %36 : vector<1x32x1xf32> to vector<32x1xf32>
    %38 = vector.broadcast %37 : vector<32x1xf32> to vector<32x512xf32>
    %39 = arith.addf %35, %38 : vector<32x512xf32>
    %c2 = arith.constant 2 : index
    %c0_37 = arith.constant 0 : index
    %c0_38 = arith.constant 0 : index
    %40 = vector.load %arg2[%c2, %c0_37, %c0_38] : memref<3x32x32xf32, #tpu.memory_space<vmem>>, vector<1x32x32xf32>
    %41 = vector.shape_cast %40 : vector<1x32x32xf32> to vector<32x32xf32>
    %cst_39 = arith.constant dense<0.000000e+00> : vector<32x512xf32>
    %42 = tpu.matmul %41, %39, %cst_39 {dimension_numbers = #tpu.dot_dimension_numbers<[1], [0], [0], [1], [0, 0, 1, 1], [], []>} : vector<32x32xf32>, vector<32x512xf32>, vector<32x512xf32> -> vector<32x512xf32>
    %c2_40 = arith.constant 2 : index
    %c0_41 = arith.constant 0 : index
    %c0_42 = arith.constant 0 : index
    %43 = vector.load %arg3[%c2_40, %c0_41, %c0_42] : memref<3x32x1xf32, #tpu.memory_space<vmem>>, vector<1x32x1xf32>
    %44 = vector.shape_cast %43 : vector<1x32x1xf32> to vector<32x1xf32>
    %45 = vector.broadcast %44 : vector<32x1xf32> to vector<32x512xf32>
    %46 = arith.addf %42, %45 : vector<32x512xf32>
    %cst_43 = arith.constant 0.000000e+00 : f32
    %47 = vector.broadcast %cst_43 : f32 to vector<32x512xf32>
    %48 = arith.maximumf %46, %47 : vector<32x512xf32>
    %c96 = arith.constant 96 : index
    %c0_44 = arith.constant 0 : index
    %49 = vector.load %arg7[%c96, %c0_44] : memref<128x512xf32, #tpu.memory_space<vmem>>, vector<32x512xf32>
    tpu.vector_store %arg7[%c96, %c0_44], %48 {strides = array<i32>} : memref<128x512xf32, #tpu.memory_space<vmem>>, vector<32x512xf32>,
    %c2_45 = arith.constant 2 : index
    %c0_46 = arith.constant 0 : index
    %c0_47 = arith.constant 0 : index
    %50 = vector.load %arg4[%c2_45, %c0_46, %c0_47] : memref<3x32x128xf32, #tpu.memory_space<vmem>>, vector<1x32x128xf32>
    %51 = vector.shape_cast %50 : vector<1x32x128xf32> to vector<32x128xf32>
    %c0_48 = arith.constant 0 : index
    %c0_49 = arith.constant 0 : index
    %52 = vector.load %arg7[%c0_48, %c0_49] : memref<128x512xf32, #tpu.memory_space<vmem>>, vector<128x512xf32>
    %cst_50 = arith.constant dense<0.000000e+00> : vector<32x512xf32>
    %53 = tpu.matmul %51, %52, %cst_50 {dimension_numbers = #tpu.dot_dimension_numbers<[1], [0], [0], [1], [0, 0, 1, 1], [], []>} : vector<32x128xf32>, vector<128x512xf32>, vector<32x512xf32> -> vector<32x512xf32>
    %c2_51 = arith.constant 2 : index
    %c0_52 = arith.constant 0 : index
    %c0_53 = arith.constant 0 : index
    %54 = vector.load %arg5[%c2_51, %c0_52, %c0_53] : memref<3x32x1xf32, #tpu.memory_space<vmem>>, vector<1x32x1xf32>
    %55 = vector.shape_cast %54 : vector<1x32x1xf32> to vector<32x1xf32>
    %56 = vector.broadcast %55 : vector<32x1xf32> to vector<32x512xf32>
    %57 = arith.addf %53, %56 : vector<32x512xf32>
    %c0_54 = arith.constant 0 : index
    %c0_55 = arith.constant 0 : index
    %58 = vector.load %arg6[%c0_54, %c0_55] : memref<32x512xf32, #tpu.memory_space<vmem>>, vector<32x512xf32>
    tpu.vector_store %arg6[%c0_54, %c0_55], %57 {strides = array<i32>} : memref<32x512xf32, #tpu.memory_space<vmem>>, vector<32x512xf32>,
    return
  }
  func.func @transform_0(%arg0: i32) -> (i32, i32) {
    %c0_i32 = arith.constant 0 : i32
    %c0_i32_0 = arith.constant 0 : i32
    return %c0_i32, %arg0 : i32, i32
  }
  func.func @transform_1(%arg0: i32) -> (i32, i32, i32) {
    %c0_i32 = arith.constant 0 : i32
    %c0_i32_0 = arith.constant 0 : i32
    %c0_i32_1 = arith.constant 0 : i32
    %c0_i32_2 = arith.constant 0 : i32
    return %c0_i32, %c0_i32_0, %c0_i32_1 : i32, i32, i32
  }
  func.func @transform_2(%arg0: i32) -> (i32, i32, i32) {
    %c0_i32 = arith.constant 0 : i32
    %c0_i32_0 = arith.constant 0 : i32
    %c0_i32_1 = arith.constant 0 : i32
    %c0_i32_2 = arith.constant 0 : i32
    return %c0_i32, %c0_i32_0, %c0_i32_1 : i32, i32, i32
  }
  func.func @transform_3(%arg0: i32) -> (i32, i32, i32) {
    %c0_i32 = arith.constant 0 : i32
    %c0_i32_0 = arith.constant 0 : i32
    %c0_i32_1 = arith.constant 0 : i32
    %c0_i32_2 = arith.constant 0 : i32
    return %c0_i32, %c0_i32_0, %c0_i32_1 : i32, i32, i32
  }
  func.func @transform_4(%arg0: i32) -> (i32, i32, i32) {
    %c0_i32 = arith.constant 0 : i32
    %c0_i32_0 = arith.constant 0 : i32
    %c0_i32_1 = arith.constant 0 : i32
    %c0_i32_2 = arith.constant 0 : i32
    return %c0_i32, %c0_i32_0, %c0_i32_1 : i32, i32, i32
  }
  func.func @transform_5(%arg0: i32) -> (i32, i32) {
    %c0_i32 = arith.constant 0 : i32
    %c0_i32_0 = arith.constant 0 : i32
    return %c0_i32, %arg0 : i32, i32
  }
}

</mosaic_0001>

<llo_original>
// kernel: tpu_custom_call.1
$region0: #{tpu_custom_call.1}
  #allocation0 [shape = 'u32[]', space=smem, size = 0x4, offset = 0x4, fixed_abs, tag = 'smem constant byte address 0x4 - core index']
  #allocation1 [shape = 'u32[72,128]{1,0:T(1,128)}', space=vmem, size = 0x9000, scoped, tag = 'internal scratch']
  #allocation2 [shape = 'f32[128,512]{1,0:T(8,128)}', space=vmem, size = 0x40000, scoped, tag = 'scratch operand']
  %s0 = inlined_call_operand.hbm [shape: f32[32,1024], index: 0, kind: input, shape index: {}]
  %s1 = inlined_call_operand.vmem [shape: f32[3,32,32], index: 1, kind: input, shape index: {}]
  %s2 = inlined_call_operand.vmem [shape: f32[3,32,1], index: 2, kind: input, shape index: {}]
  %s3 = inlined_call_operand.vmem [shape: f32[3,32,128], index: 3, kind: input, shape index: {}]
  %s4 = inlined_call_operand.vmem [shape: f32[3,32,1], index: 4, kind: input, shape index: {}]
  %s5 = inlined_call_operand.hbm [shape: f32[32,1024], index: 5, kind: output, shape index: {}]
  %s6 = sld [smem:[#allocation0]]
  $region57: #{tpu_custom_call.1} parent=0
    _
  %s8 = ssub.s32 1, %s6
  %s9 = scalar_select 0, %s8, %s6
  $region1: #{tpu_custom_call.1} parent=0
    #allocation3 [shape = 'u8[131072]{0}', space=vmem, size = 0x20000, scoped, tag = 'input window, operand 0']
    #allocation4 [shape = 's32[2]{0}', space=sflag, size = 0x8, scoped, tag = 'scoped memory for tpu_custom_call.1']
    #allocation5 [shape = 's32[2]{0}', space=sflag, size = 0x8, scoped, tag = 'scoped memory for tpu_custom_call.1']
    #allocation6 [shape = 'u8[131072]{0}', space=vmem, size = 0x20000, scoped, tag = 'output window, operand 0']
    %10 = vsyncpa [#allocation4], 0
    %s11 = scalar_lea.sflag [#allocation4], 1
    %12 = vsyncpa %s11, 0
    %13 = vsyncpa [#allocation5], 0
    %s14 = scalar_lea.sflag [#allocation5], 1
    %15 = vsyncpa %s14, 0
    loop: start=0, step=1, limit=4
    $region2: #{tpu_custom_call.1} parent=1 // loop_pre_header
      _
    $region3: #{tpu_custom_call.1} parent=1 // loop_header
      %s17 = sphi 0, %s21
      %p18 = scmp.ge.s32.totalorder %s17, 4
      %s27 = sphi 0, %s29
      %s30 = sphi 0, %s27
      %s31 = sphi 0, %s30
      %s47 = sphi 0, %s31
      %s51 = sphi 0, %s51
      %s53 = sphi 0, %s51
      %s54 = sphi 0, %s53
      %s68 = sphi 0, %s54
      %s72 = sphi 0, %s72
      %s74 = sphi 0, %s72
      %s75 = sphi 0, %s74
      %s89 = sphi 0, %s75
      %s93 = sphi 0, %s93
      %s95 = sphi 0, %s93
      %s96 = sphi 0, %s95
      %s110 = sphi 0, %s96
      %s114 = sphi 0, %s114
      %s116 = sphi 0, %s114
      %s117 = sphi 0, %s116
      %s131 = sphi 0, %s117
      %s137 = sphi 0, %s139
      %s140 = sphi 0, %s137
      %s141 = sphi 0, %s140
      %s157 = sphi 0, %s141
    $region4: #{tpu_custom_call.1} parent=1 // loop_header_branch
      %20 = sbr.rel (%p18) target = $region8
    $region5: #{tpu_custom_call.1} parent=1 // loop_body
      %s22 = ssub.s32 %s17, 1
      %s23 = ssub.s32 %s17, 2
      %s24 = sadd.s32 %s17, 1
      %s25 = ssub.s32 %s17, %s24
      %p26 = scmp.eq.s32.totalorder %s25, 0
      %s28 = sadd.s32 %s27, 1
      %s29 = scalar_select %p26, %s27, %s28
      %p32 = pneg %p26
      %p33 = scmp.eq.s32.totalorder %s17, 1
      %p34 = por %p32, %p33
      %p35 = scmp.ne.s32.totalorder %s27, %s30
      %p36 = scmp.eq.s32.totalorder %s17, 0
      %p37 = por %p35, %p36
      %p38 = scmp.ne.s32.totalorder %s27, %s30
      %p39 = scmp.eq.s32.totalorder %s22, 1
      %p40 = por %p38, %p39
      %p41 = scmp.ne.s32.totalorder %s30, %s31
      %p42 = scmp.eq.s32.totalorder %s22, 0
      %p43 = por %p41, %p42
      %p44 = scmp.ne.s32.totalorder %s30, %s31
      %p45 = scmp.eq.s32.totalorder %s23, 1
      %p46 = por %p44, %p45
      %p48 = scmp.ne.s32.totalorder %s31, %s47
      %p49 = scmp.eq.s32.totalorder %s23, 0
      %p50 = por %p48, %p49
      %s52 = sadd.s32 %s51, 1
      %p55 = scmp.eq.s32.totalorder %s17, 1
      %p56 = scmp.ne.s32.totalorder %s51, %s53
      %p57 = scmp.eq.s32.totalorder %s17, 0
      %p58 = por %p56, %p57
      %p59 = scmp.ne.s32.totalorder %s51, %s53
      %p60 = scmp.eq.s32.totalorder %s22, 1
      %p61 = por %p59, %p60
      %p62 = scmp.ne.s32.totalorder %s53, %s54
      %p63 = scmp.eq.s32.totalorder %s22, 0
      %p64 = por %p62, %p63
      %p65 = scmp.ne.s32.totalorder %s53, %s54
      %p66 = scmp.eq.s32.totalorder %s23, 1
      %p67 = por %p65, %p66
      %p69 = scmp.ne.s32.totalorder %s54, %s68
      %p70 = scmp.eq.s32.totalorder %s23, 0
      %p71 = por %p69, %p70
      %s73 = sadd.s32 %s72, 1
      %p76 = scmp.eq.s32.totalorder %s17, 1
      %p77 = scmp.ne.s32.totalorder %s72, %s74
      %p78 = scmp.eq.s32.totalorder %s17, 0
      %p79 = por %p77, %p78
      %p80 = scmp.ne.s32.totalorder %s72, %s74
      %p81 = scmp.eq.s32.totalorder %s22, 1
      %p82 = por %p80, %p81
      %p83 = scmp.ne.s32.totalorder %s74, %s75
      %p84 = scmp.eq.s32.totalorder %s22, 0
      %p85 = por %p83, %p84
      %p86 = scmp.ne.s32.totalorder %s74, %s75
      %p87 = scmp.eq.s32.totalorder %s23, 1
      %p88 = por %p86, %p87
      %p90 = scmp.ne.s32.totalorder %s75, %s89
      %p91 = scmp.eq.s32.totalorder %s23, 0
      %p92 = por %p90, %p91
      %s94 = sadd.s32 %s93, 1
      %p97 = scmp.eq.s32.totalorder %s17, 1
      %p98 = scmp.ne.s32.totalorder %s93, %s95
      %p99 = scmp.eq.s32.totalorder %s17, 0
      %p100 = por %p98, %p99
      %p101 = scmp.ne.s32.totalorder %s93, %s95
      %p102 = scmp.eq.s32.totalorder %s22, 1
      %p103 = por %p101, %p102
      %p104 = scmp.ne.s32.totalorder %s95, %s96
      %p105 = scmp.eq.s32.totalorder %s22, 0
      %p106 = por %p104, %p105
      %p107 = scmp.ne.s32.totalorder %s95, %s96
      %p108 = scmp.eq.s32.totalorder %s23, 1
      %p109 = por %p107, %p108
      %p111 = scmp.ne.s32.totalorder %s96, %s110
      %p112 = scmp.eq.s32.totalorder %s23, 0
      %p113 = por %p111, %p112
      %s115 = sadd.s32 %s114, 1
      %p118 = scmp.eq.s32.totalorder %s17, 1
      %p119 = scmp.ne.s32.totalorder %s114, %s116
      %p120 = scmp.eq.s32.totalorder %s17, 0
      %p121 = por %p119, %p120
      %p122 = scmp.ne.s32.totalorder %s114, %s116
      %p123 = scmp.eq.s32.totalorder %s22, 1
      %p124 = por %p122, %p123
      %p125 = scmp.ne.s32.totalorder %s116, %s117
      %p126 = scmp.eq.s32.totalorder %s22, 0
      %p127 = por %p125, %p126
      %p128 = scmp.ne.s32.totalorder %s116, %s117
      %p129 = scmp.eq.s32.totalorder %s23, 1
      %p130 = por %p128, %p129
      %p132 = scmp.ne.s32.totalorder %s117, %s131
      %p133 = scmp.eq.s32.totalorder %s23, 0
      %p134 = por %p132, %p133
      %s135 = ssub.s32 %s17, %s24
      %p136 = scmp.eq.s32.totalorder %s135, 0
      %s138 = sadd.s32 %s137, 1
      %s139 = scalar_select %p136, %s137, %s138
      %p142 = pneg %p136
      %p143 = scmp.eq.s32.totalorder %s17, 1
      %p144 = por %p142, %p143
      %p145 = scmp.ne.s32.totalorder %s137, %s140
      %p146 = scmp.eq.s32.totalorder %s17, 0
      %p147 = por %p145, %p146
      %p148 = scmp.ne.s32.totalorder %s137, %s140
      %p149 = scmp.eq.s32.totalorder %s22, 1
      %p150 = por %p148, %p149
      %p151 = scmp.ne.s32.totalorder %s140, %s141
      %p152 = scmp.eq.s32.totalorder %s22, 0
      %p153 = por %p151, %p152
      %p154 = scmp.ne.s32.totalorder %s140, %s141
      %p155 = scmp.eq.s32.totalorder %s23, 1
      %p156 = por %p154, %p155
      %p158 = scmp.ne.s32.totalorder %s141, %s157
      %p159 = scmp.eq.s32.totalorder %s23, 0
      %p160 = por %p158, %p159
      %p161 = scmp.le.s32.totalorder 1, %s17
      %p162 = scmp.lt.s32.totalorder %s17, 3
      %p163 = pnand %p161, %p162
      %p164 = pneg %p163
      // Predicated region
      $region9: #{tpu_custom_call.1} parent=5 // pred_check
        _
      $region10: #{tpu_custom_call.1} parent=5 // pred_check_branch
        %166 = sbr.rel (%p163) target = $region12
      $region11: #{tpu_custom_call.1} parent=5 // pred_region
        %s167 = ssub.s32 %s17, 1
        // Predicated region
        $region13: #{tpu_custom_call.1} parent=11 // pred_check
          %p168 = pneg %p64
        $region14: #{tpu_custom_call.1} parent=11 // pred_check_branch
          %170 = sbr.rel (%p168) target = $region16
        $region15: #{tpu_custom_call.1} parent=11 // pred_region
          _
        $region16: #{tpu_custom_call.1} parent=11 // pred_fallthru
          _
        // Predicated region
        $region17: #{tpu_custom_call.1} parent=11 // pred_check
          %p171 = pneg %p85
        $region18: #{tpu_custom_call.1} parent=11 // pred_check_branch
          %173 = sbr.rel (%p171) target = $region20
        $region19: #{tpu_custom_call.1} parent=11 // pred_region
          _
        $region20: #{tpu_custom_call.1} parent=11 // pred_fallthru
          _
        // Predicated region
        $region21: #{tpu_custom_call.1} parent=11 // pred_check
          %p174 = pneg %p106
        $region22: #{tpu_custom_call.1} parent=11 // pred_check_branch
          %176 = sbr.rel (%p174) target = $region24
        $region23: #{tpu_custom_call.1} parent=11 // pred_region
          _
        $region24: #{tpu_custom_call.1} parent=11 // pred_fallthru
          _
        // Predicated region
        $region25: #{tpu_custom_call.1} parent=11 // pred_check
          %p177 = pneg %p127
        $region26: #{tpu_custom_call.1} parent=11 // pred_check_branch
          %179 = sbr.rel (%p177) target = $region28
        $region27: #{tpu_custom_call.1} parent=11 // pred_region
          _
        $region28: #{tpu_custom_call.1} parent=11 // pred_fallthru
          _
      $region12: #{tpu_custom_call.1} parent=5 // pred_fallthru
        _
      %p180 = scmp.lt.s32.totalorder %s17, 2
      // Predicated region
      $region29: #{tpu_custom_call.1} parent=5 // pred_check
        %p181 = pneg %p180
      $region30: #{tpu_custom_call.1} parent=5 // pred_check_branch
        %183 = sbr.rel (%p181) target = $region32
      $region31: #{tpu_custom_call.1} parent=5 // pred_region
        // Predicated region
        $region33: #{tpu_custom_call.1} parent=31 // pred_check
          %p184 = pneg %p37
        $region34: #{tpu_custom_call.1} parent=31 // pred_check_branch
          %186 = sbr.rel (%p184) target = $region36
        $region35: #{tpu_custom_call.1} parent=31 // pred_region
          %s187 = sand.u32 %s27, 1
          %s188 = scalar_lea.sflag [#allocation4], %s187
          %s189 = sand.u32 %s27, 1
          %s190 = smul.addr %s189, 128
          %s191 = scalar_lea.vmem [#allocation3], %s190
          %s192 = smul.u32 4, %s17
          %194 = vsyncadd %s188, 0
          %s195 = smul.addr %s192, 8
          %s196 = scalar_lea.hbm %s0, %s195
          %s197 = sshll.u32 %s196, 4
          %s198 = int_to_ptr.hbm [resolvable:$true] %s197
          %s199 = sshll.u32 %s191, 4
          %s200 = int_to_ptr.vmem [resolvable:$true] %s199
          %205 = dma.hbm_to_vmem [thread:$0]  %s198, 2048, %s200, %s188, 1024, 512, 32
        $region36: #{tpu_custom_call.1} parent=31 // pred_fallthru
          _
      $region32: #{tpu_custom_call.1} parent=5 // pred_fallthru
        _
      %p206 = scmp.le.s32.totalorder 1, %s17
      %p207 = scmp.lt.s32.totalorder %s17, 3
      %p208 = pnand %p206, %p207
      %p209 = pneg %p208
      // Predicated region
      $region37: #{tpu_custom_call.1} parent=5 // pred_check
        _
      $region38: #{tpu_custom_call.1} parent=5 // pred_check_branch
        %211 = sbr.rel (%p208) target = $region40
      $region39: #{tpu_custom_call.1} parent=5 // pred_region
        %s212 = ssub.s32 %s17, 1
        %s213 = sand.u32 %s30, 1
        %s214 = scalar_lea.sflag [#allocation4], %s213
        %s215 = sand.u32 %s30, 1
        %s216 = smul.addr %s215, 128
        %s217 = scalar_lea.vmem [#allocation3], %s216
        // Predicated region
        $region41: #{tpu_custom_call.1} parent=39 // pred_check
          %p218 = pneg %p43
        $region42: #{tpu_custom_call.1} parent=39 // pred_check_branch
          %220 = sbr.rel (%p218) target = $region44
        $region43: #{tpu_custom_call.1} parent=39 // pred_region
          %222 = dma.done %s214, 2048
        $region44: #{tpu_custom_call.1} parent=39 // pred_fallthru
          _
        %s223 = sand.u32 %s30, 1
        %s224 = scalar_lea.sflag [#allocation4], %s223
        %s225 = sand.u32 %s30, 1
        %s226 = smul.addr %s225, 128
        %s227 = scalar_lea.vmem [#allocation3], %s226
        %p228 = pneg %p43
        %p229 = pneg %p40
        %p230 = pneg %p64
        %p231 = pneg %p61
        %p232 = pneg %p85
        %p233 = pneg %p82
        %p234 = pneg %p106
        %p235 = pneg %p103
        %p236 = pneg %p127
        %p237 = pneg %p124
        %p238 = pneg %p153
        %p239 = pneg %p150
        %s240 = sand.u32 %s140, 1
        %s241 = scalar_lea.sflag [#allocation5], %s240
        %s242 = sand.u32 %s140, 1
        %s243 = smul.addr %s242, 128
        %s244 = scalar_lea.vmem [#allocation6], %s243
        %s245 = smul.u32 4, %s22
        %s246 = smul.u32 4, %s22
        %v247 = vld [vmem:[%s217] sm:$0xff]
        %v248 = vld [vmem:[%s217 + $0x8] sm:$0xff]
        %v249 = vld [vmem:[%s217 + $0x10] sm:$0xff]
        %v250 = vld [vmem:[%s217 + $0x18] sm:$0xff]
        %v251 = vld [vmem:[%s217 + $0x20] sm:$0xff]
        %v252 = vld [vmem:[%s217 + $0x28] sm:$0xff]
        %v253 = vld [vmem:[%s217 + $0x30] sm:$0xff]
        %v254 = vld [vmem:[%s217 + $0x38] sm:$0xff]
        %v255 = vld [vmem:[%s217 + $0x40] sm:$0xff]
        %v256 = vld [vmem:[%s217 + $0x48] sm:$0xff]
        %v257 = vld [vmem:[%s217 + $0x50] sm:$0xff]
        %v258 = vld [vmem:[%s217 + $0x58] sm:$0xff]
        %v259 = vld [vmem:[%s217 + $0x60] sm:$0xff]
        %v260 = vld [vmem:[%s217 + $0x68] sm:$0xff]
        %v261 = vld [vmem:[%s217 + $0x70] sm:$0xff]
        %v262 = vld [vmem:[%s217 + $0x78] sm:$0xff]
        %263 = vst [vmem:[#allocation2] sm:$0xff] %v247
        %264 = vst [vmem:[#allocation2 + $0x8] sm:$0xff] %v248
        %265 = vst [vmem:[#allocation2 + $0x10] sm:$0xff] %v249
        %266 = vst [vmem:[#allocation2 + $0x18] sm:$0xff] %v250
        %267 = vst [vmem:[#allocation2 + $0x20] sm:$0xff] %v251
        %268 = vst [vmem:[#allocation2 + $0x28] sm:$0xff] %v252
        %269 = vst [vmem:[#allocation2 + $0x30] sm:$0xff] %v253
        %270 = vst [vmem:[#allocation2 + $0x38] sm:$0xff] %v254
        %271 = vst [vmem:[#allocation2 + $0x40] sm:$0xff] %v255
        %272 = vst [vmem:[#allocation2 + $0x48] sm:$0xff] %v256
        %273 = vst [vmem:[#allocation2 + $0x50] sm:$0xff] %v257
        %274 = vst [vmem:[#allocation2 + $0x58] sm:$0xff] %v258
        %275 = vst [vmem:[#allocation2 + $0x60] sm:$0xff] %v259
        %276 = vst [vmem:[#allocation2 + $0x68] sm:$0xff] %v260
        %277 = vst [vmem:[#allocation2 + $0x70] sm:$0xff] %v261
        %278 = vst [vmem:[#allocation2 + $0x78] sm:$0xff] %v262
        %v279 = vld [vmem:[%s1] sm:$0xff]
        %v280 = vld [vmem:[%s1 + $0x8] sm:$0xff]
        %v281 = vld [vmem:[%s1 + $0x10] sm:$0xff]
        %v282 = vld [vmem:[%s1 + $0x18] sm:$0xff]
        %v283 = vld [vmem:[%s2] sm:$0xff]
        %v284 = vld [vmem:[%s2 + $0x8] sm:$0xff]
        %v285 = vld [vmem:[%s2 + $0x10] sm:$0xff]
        %v286 = vld [vmem:[%s2 + $0x18] sm:$0xff]
        %288 = vset.pattern.permute.xlu0 0
        %289 = vperm.xlu0 %288, %v283
        %v290 = vpop.permute.xlu0 %289
        %293 = vset.pattern.permute.xlu0 0
        %294 = vperm.xlu0 %293, %v284
        %v295 = vpop.permute.xlu0 %294
        %298 = vset.pattern.permute.xlu0 0
        %299 = vperm.xlu0 %298, %v285
        %v300 = vpop.permute.xlu0 %299
        %303 = vset.pattern.permute.xlu0 0
        %304 = vperm.xlu0 %303, %v286
        %v305 = vpop.permute.xlu0 %304
        %vm307 = vcmask 261120
        %v309 = vsel %vm307, %v279, 0
        %v312 = vsel %vm307, %v280, 0
        %v315 = vsel %vm307, %v281, 0
        %v318 = vsel %vm307, %v282, 0
        %320 = vmatpush.msra.mxu0 0.0
        %321 = vmatpush.msra.mxu0 0.0
        %322 = vmatpush.msra.mxu0 0.0
        %323 = vmatpush.msra.mxu0 0.0
        %324 = vmatpush.msra.mxu0 0.0
        %325 = vmatpush.msra.mxu0 0.0
        %326 = vmatpush.msra.mxu0 0.0
        %327 = vmatpush.msra.mxu0 0.0
        %328 = vmatpush.msra.mxu0 0.0
        %329 = vmatpush.msra.mxu0 0.0
        %330 = vmatpush.msra.mxu0 0.0
        %331 = vmatpush.msra.mxu0 0.0
        %332 = vmatpush.msra.mxu0 %v259
        %333 = vmatpush.msra.mxu0 %v255
        %334 = vmatpush.msra.mxu0 %v251
        %335 = vmatpush.msra.mxu0 %v247
        %336 = vmatmul.f32.gmra.mxu0 %v309
        %v337 = vpop.f32.mrf.mxu0
        %v338 = vadd.f32 %v290, %v337
        %339 = vmatmul.f32.gmra.mxu0 %v312
        %v340 = vpop.f32.mrf.mxu0
        %v341 = vadd.f32 %v295, %v340
        %342 = vmatmul.f32.gmra.mxu0 %v315
        %v343 = vpop.f32.mrf.mxu0
        %v344 = vadd.f32 %v300, %v343
        %345 = vmatmul.f32.gmra.mxu0 %v318
        %v346 = vpop.f32.mrf.mxu0
        %v347 = vadd.f32 %v305, %v346
        %348 = vdwg.mxu0
        %349 = vmatpush.msra.mxu0 0.0
        %350 = vmatpush.msra.mxu0 0.0
        %351 = vmatpush.msra.mxu0 0.0
        %352 = vmatpush.msra.mxu0 0.0
        %353 = vmatpush.msra.mxu0 0.0
        %354 = vmatpush.msra.mxu0 0.0
        %355 = vmatpush.msra.mxu0 0.0
        %356 = vmatpush.msra.mxu0 0.0
        %357 = vmatpush.msra.mxu0 0.0
        %358 = vmatpush.msra.mxu0 0.0
        %359 = vmatpush.msra.mxu0 0.0
        %360 = vmatpush.msra.mxu0 0.0
        %361 = vmatpush.msra.mxu0 %v260
        %362 = vmatpush.msra.mxu0 %v256
        %363 = vmatpush.msra.mxu0 %v252
        %364 = vmatpush.msra.mxu0 %v248
        %365 = vmatmul.f32.gmra.mxu0 %v309
        %v366 = vpop.f32.mrf.mxu0
        %v367 = vadd.f32 %v290, %v366
        %368 = vmatmul.f32.gmra.mxu0 %v312
        %v369 = vpop.f32.mrf.mxu0
        %v370 = vadd.f32 %v295, %v369
        %371 = vmatmul.f32.gmra.mxu0 %v315
        %v372 = vpop.f32.mrf.mxu0
        %v373 = vadd.f32 %v300, %v372
        %374 = vmatmul.f32.gmra.mxu0 %v318
        %v375 = vpop.f32.mrf.mxu0
        %v376 = vadd.f32 %v305, %v375
        %377 = vdwg.mxu0
        %378 = vmatpush.msra.mxu0 0.0
        %379 = vmatpush.msra.mxu0 0.0
        %380 = vmatpush.msra.mxu0 0.0
        %381 = vmatpush.msra.mxu0 0.0
        %382 = vmatpush.msra.mxu0 0.0
        %383 = vmatpush.msra.mxu0 0.0
        %384 = vmatpush.msra.mxu0 0.0
        %385 = vmatpush.msra.mxu0 0.0
        %386 = vmatpush.msra.mxu0 0.0
        %387 = vmatpush.msra.mxu0 0.0
        %388 = vmatpush.msra.mxu0 0.0
        %389 = vmatpush.msra.mxu0 0.0
        %390 = vmatpush.msra.mxu0 %v261
        %391 = vmatpush.msra.mxu0 %v257
        %392 = vmatpush.msra.mxu0 %v253
        %393 = vmatpush.msra.mxu0 %v249
        %394 = vmatmul.f32.gmra.mxu0 %v309
        %v395 = vpop.f32.mrf.mxu0
        %v396 = vadd.f32 %v290, %v395
        %397 = vmatmul.f32.gmra.mxu0 %v312
        %v398 = vpop.f32.mrf.mxu0
        %v399 = vadd.f32 %v295, %v398
        %400 = vmatmul.f32.gmra.mxu0 %v315
        %v401 = vpop.f32.mrf.mxu0
        %v402 = vadd.f32 %v300, %v401
        %403 = vmatmul.f32.gmra.mxu0 %v318
        %v404 = vpop.f32.mrf.mxu0
        %v405 = vadd.f32 %v305, %v404
        %406 = vdwg.mxu0
        %407 = vmatpush.msra.mxu0 0.0
        %408 = vmatpush.msra.mxu0 0.0
        %409 = vmatpush.msra.mxu0 0.0
        %410 = vmatpush.msra.mxu0 0.0
        %411 = vmatpush.msra.mxu0 0.0
        %412 = vmatpush.msra.mxu0 0.0
        %413 = vmatpush.msra.mxu0 0.0
        %414 = vmatpush.msra.mxu0 0.0
        %415 = vmatpush.msra.mxu0 0.0
        %416 = vmatpush.msra.mxu0 0.0
        %417 = vmatpush.msra.mxu0 0.0
        %418 = vmatpush.msra.mxu0 0.0
        %419 = vmatpush.msra.mxu0 %v262
        %420 = vmatpush.msra.mxu0 %v258
        %421 = vmatpush.msra.mxu0 %v254
        %422 = vmatpush.msra.mxu0 %v250
        %423 = vmatmul.f32.gmra.mxu0 %v309
        %v424 = vpop.f32.mrf.mxu0
        %v425 = vadd.f32 %v290, %v424
        %426 = vmatmul.f32.gmra.mxu0 %v312
        %v427 = vpop.f32.mrf.mxu0
        %v428 = vadd.f32 %v295, %v427
        %429 = vmatmul.f32.gmra.mxu0 %v315
        %v430 = vpop.f32.mrf.mxu0
        %v431 = vadd.f32 %v300, %v430
        %432 = vmatmul.f32.gmra.mxu0 %v318
        %v433 = vpop.f32.mrf.mxu0
        %v434 = vadd.f32 %v305, %v433
        %435 = vdwg.mxu0
        %v436 = vmax.f32 %v338, 0.0
        %v437 = vmax.f32 %v367, 0.0
        %v438 = vmax.f32 %v396, 0.0
        %v439 = vmax.f32 %v425, 0.0
        %v440 = vmax.f32 %v341, 0.0
        %v441 = vmax.f32 %v370, 0.0
        %v442 = vmax.f32 %v399, 0.0
        %v443 = vmax.f32 %v428, 0.0
        %v444 = vmax.f32 %v344, 0.0
        %v445 = vmax.f32 %v373, 0.0
        %v446 = vmax.f32 %v402, 0.0
        %v447 = vmax.f32 %v431, 0.0
        %v448 = vmax.f32 %v347, 0.0
        %v449 = vmax.f32 %v376, 0.0
        %v450 = vmax.f32 %v405, 0.0
        %v451 = vmax.f32 %v434, 0.0
        %452 = vst [vmem:[#allocation2 + $0x80] sm:$0xff] %v436
        %453 = vst [vmem:[#allocation2 + $0x88] sm:$0xff] %v437
        %454 = vst [vmem:[#allocation2 + $0x90] sm:$0xff] %v438
        %455 = vst [vmem:[#allocation2 + $0x98] sm:$0xff] %v439
        %456 = vst [vmem:[#allocation2 + $0xa0] sm:$0xff] %v440
        %457 = vst [vmem:[#allocation2 + $0xa8] sm:$0xff] %v441
        %458 = vst [vmem:[#allocation2 + $0xb0] sm:$0xff] %v442
        %459 = vst [vmem:[#allocation2 + $0xb8] sm:$0xff] %v443
        %460 = vst [vmem:[#allocation2 + $0xc0] sm:$0xff] %v444
        %461 = vst [vmem:[#allocation2 + $0xc8] sm:$0xff] %v445
        %462 = vst [vmem:[#allocation2 + $0xd0] sm:$0xff] %v446
        %463 = vst [vmem:[#allocation2 + $0xd8] sm:$0xff] %v447
        %464 = vst [vmem:[#allocation2 + $0xe0] sm:$0xff] %v448
        %465 = vst [vmem:[#allocation2 + $0xe8] sm:$0xff] %v449
        %466 = vst [vmem:[#allocation2 + $0xf0] sm:$0xff] %v450
        %467 = vst [vmem:[#allocation2 + $0xf8] sm:$0xff] %v451
        %v468 = vld [vmem:[%s3] sm:$0xff]
        %v469 = vld [vmem:[%s3 + $0x8] sm:$0xff]
        %v470 = vld [vmem:[%s3 + $0x10] sm:$0xff]
        %v471 = vld [vmem:[%s3 + $0x18] sm:$0xff]
        %v472 = vld [vmem:[#allocation2] sm:$0xff]
        %v473 = vld [vmem:[#allocation2 + $0x8] sm:$0xff]
        %v474 = vld [vmem:[#allocation2 + $0x10] sm:$0xff]
        %v475 = vld [vmem:[#allocation2 + $0x18] sm:$0xff]
        %v476 = vld [vmem:[#allocation2 + $0x20] sm:$0xff]
        %v477 = vld [vmem:[#allocation2 + $0x28] sm:$0xff]
        %v478 = vld [vmem:[#allocation2 + $0x30] sm:$0xff]
        %v479 = vld [vmem:[#allocation2 + $0x38] sm:$0xff]
        %v480 = vld [vmem:[#allocation2 + $0x40] sm:$0xff]
        %v481 = vld [vmem:[#allocation2 + $0x48] sm:$0xff]
        %v482 = vld [vmem:[#allocation2 + $0x50] sm:$0xff]
        %v483 = vld [vmem:[#allocation2 + $0x58] sm:$0xff]
        %v484 = vld [vmem:[#allocation2 + $0x60] sm:$0xff]
        %v485 = vld [vmem:[#allocation2 + $0x68] sm:$0xff]
        %v486 = vld [vmem:[#allocation2 + $0x70] sm:$0xff]
        %v487 = vld [vmem:[#allocation2 + $0x78] sm:$0xff]
        %v488 = vld [vmem:[#allocation2 + $0x80] sm:$0xff]
        %v489 = vld [vmem:[#allocation2 + $0x88] sm:$0xff]
        %v490 = vld [vmem:[#allocation2 + $0x90] sm:$0xff]
        %v491 = vld [vmem:[#allocation2 + $0x98] sm:$0xff]
        %v492 = vld [vmem:[#allocation2 + $0xa0] sm:$0xff]
        %v493 = vld [vmem:[#allocation2 + $0xa8] sm:$0xff]
        %v494 = vld [vmem:[#allocation2 + $0xb0] sm:$0xff]
        %v495 = vld [vmem:[#allocation2 + $0xb8] sm:$0xff]
        %v496 = vld [vmem:[#allocation2 + $0xc0] sm:$0xff]
        %v497 = vld [vmem:[#allocation2 + $0xc8] sm:$0xff]
        %v498 = vld [vmem:[#allocation2 + $0xd0] sm:$0xff]
        %v499 = vld [vmem:[#allocation2 + $0xd8] sm:$0xff]
        %v500 = vld [vmem:[#allocation2 + $0xe0] sm:$0xff]
        %v501 = vld [vmem:[#allocation2 + $0xe8] sm:$0xff]
        %v502 = vld [vmem:[#allocation2 + $0xf0] sm:$0xff]
        %v503 = vld [vmem:[#allocation2 + $0xf8] sm:$0xff]
        %v504 = vld [vmem:[%s4] sm:$0xff]
        %v505 = vld [vmem:[%s4 + $0x8] sm:$0xff]
        %v506 = vld [vmem:[%s4 + $0x10] sm:$0xff]
        %v507 = vld [vmem:[%s4 + $0x18] sm:$0xff]
        %509 = vset.pattern.permute.xlu0 0
        %510 = vperm.xlu0 %509, %v504
        %v511 = vpop.permute.xlu0 %510
        %514 = vset.pattern.permute.xlu0 0
        %515 = vperm.xlu0 %514, %v505
        %v516 = vpop.permute.xlu0 %515
        %519 = vset.pattern.permute.xlu0 0
        %520 = vperm.xlu0 %519, %v506
        %v521 = vpop.permute.xlu0 %520
        %524 = vset.pattern.permute.xlu0 0
        %525 = vperm.xlu0 %524, %v507
        %v526 = vpop.permute.xlu0 %525
        %vm528 = vcmask 523264
        %v530 = vsel %vm528, %v468, 0
        %v533 = vsel %vm528, %v469, 0
        %v536 = vsel %vm528, %v470, 0
        %v539 = vsel %vm528, %v471, 0
        %541 = vmatpush.msra.mxu0 0.0
        %542 = vmatpush.msra.mxu0 0.0
        %543 = vmatpush.msra.mxu0 0.0
        %544 = vmatpush.msra.mxu0 0.0
        %545 = vmatpush.msra.mxu0 0.0
        %546 = vmatpush.msra.mxu0 0.0
        %547 = vmatpush.msra.mxu0 0.0
        %548 = vmatpush.msra.mxu0 0.0
        %549 = vmatpush.msra.mxu0 %v500
        %550 = vmatpush.msra.mxu0 %v496
        %551 = vmatpush.msra.mxu0 %v492
        %552 = vmatpush.msra.mxu0 %v488
        %553 = vmatpush.msra.mxu0 %v484
        %554 = vmatpush.msra.mxu0 %v480
        %555 = vmatpush.msra.mxu0 %v476
        %556 = vmatpush.msra.mxu0 %v472
        %557 = vmatmul.f32.gmra.mxu0 %v530
        %v558 = vpop.f32.mrf.mxu0
        %v559 = vadd.f32 %v511, %v558
        %560 = vmatmul.f32.gmra.mxu0 %v533
        %v561 = vpop.f32.mrf.mxu0
        %v562 = vadd.f32 %v516, %v561
        %563 = vmatmul.f32.gmra.mxu0 %v536
        %v564 = vpop.f32.mrf.mxu0
        %v565 = vadd.f32 %v521, %v564
        %566 = vmatmul.f32.gmra.mxu0 %v539
        %v567 = vpop.f32.mrf.mxu0
        %v568 = vadd.f32 %v526, %v567
        %569 = vdwg.mxu0
        %570 = vmatpush.msra.mxu0 0.0
        %571 = vmatpush.msra.mxu0 0.0
        %572 = vmatpush.msra.mxu0 0.0
        %573 = vmatpush.msra.mxu0 0.0
        %574 = vmatpush.msra.mxu0 0.0
        %575 = vmatpush.msra.mxu0 0.0
        %576 = vmatpush.msra.mxu0 0.0
        %577 = vmatpush.msra.mxu0 0.0
        %578 = vmatpush.msra.mxu0 %v501
        %579 = vmatpush.msra.mxu0 %v497
        %580 = vmatpush.msra.mxu0 %v493
        %581 = vmatpush.msra.mxu0 %v489
        %582 = vmatpush.msra.mxu0 %v485
        %583 = vmatpush.msra.mxu0 %v481
        %584 = vmatpush.msra.mxu0 %v477
        %585 = vmatpush.msra.mxu0 %v473
        %586 = vmatmul.f32.gmra.mxu0 %v530
        %v587 = vpop.f32.mrf.mxu0
        %v588 = vadd.f32 %v511, %v587
        %589 = vmatmul.f32.gmra.mxu0 %v533
        %v590 = vpop.f32.mrf.mxu0
        %v591 = vadd.f32 %v516, %v590
        %592 = vmatmul.f32.gmra.mxu0 %v536
        %v593 = vpop.f32.mrf.mxu0
        %v594 = vadd.f32 %v521, %v593
        %595 = vmatmul.f32.gmra.mxu0 %v539
        %v596 = vpop.f32.mrf.mxu0
        %v597 = vadd.f32 %v526, %v596
        %598 = vdwg.mxu0
        %599 = vmatpush.msra.mxu0 0.0
        %600 = vmatpush.msra.mxu0 0.0
        %601 = vmatpush.msra.mxu0 0.0
        %602 = vmatpush.msra.mxu0 0.0
        %603 = vmatpush.msra.mxu0 0.0
        %604 = vmatpush.msra.mxu0 0.0
        %605 = vmatpush.msra.mxu0 0.0
        %606 = vmatpush.msra.mxu0 0.0
        %607 = vmatpush.msra.mxu0 %v502
        %608 = vmatpush.msra.mxu0 %v498
        %609 = vmatpush.msra.mxu0 %v494
        %610 = vmatpush.msra.mxu0 %v490
        %611 = vmatpush.msra.mxu0 %v486
        %612 = vmatpush.msra.mxu0 %v482
        %613 = vmatpush.msra.mxu0 %v478
        %614 = vmatpush.msra.mxu0 %v474
        %615 = vmatmul.f32.gmra.mxu0 %v530
        %v616 = vpop.f32.mrf.mxu0
        %v617 = vadd.f32 %v511, %v616
        %618 = vmatmul.f32.gmra.mxu0 %v533
        %v619 = vpop.f32.mrf.mxu0
        %v620 = vadd.f32 %v516, %v619
        %621 = vmatmul.f32.gmra.mxu0 %v536
        %v622 = vpop.f32.mrf.mxu0
        %v623 = vadd.f32 %v521, %v622
        %624 = vmatmul.f32.gmra.mxu0 %v539
        %v625 = vpop.f32.mrf.mxu0
        %v626 = vadd.f32 %v526, %v625
        %627 = vdwg.mxu0
        %628 = vmatpush.msra.mxu0 0.0
        %629 = vmatpush.msra.mxu0 0.0
        %630 = vmatpush.msra.mxu0 0.0
        %631 = vmatpush.msra.mxu0 0.0
        %632 = vmatpush.msra.mxu0 0.0
        %633 = vmatpush.msra.mxu0 0.0
        %634 = vmatpush.msra.mxu0 0.0
        %635 = vmatpush.msra.mxu0 0.0
        %636 = vmatpush.msra.mxu0 %v503
        %637 = vmatpush.msra.mxu0 %v499
        %638 = vmatpush.msra.mxu0 %v495
        %639 = vmatpush.msra.mxu0 %v491
        %640 = vmatpush.msra.mxu0 %v487
        %641 = vmatpush.msra.mxu0 %v483
        %642 = vmatpush.msra.mxu0 %v479
        %643 = vmatpush.msra.mxu0 %v475
        %644 = vmatmul.f32.gmra.mxu0 %v530
        %v645 = vpop.f32.mrf.mxu0
        %v646 = vadd.f32 %v511, %v645
        %647 = vmatmul.f32.gmra.mxu0 %v533
        %v648 = vpop.f32.mrf.mxu0
        %v649 = vadd.f32 %v516, %v648
        %650 = vmatmul.f32.gmra.mxu0 %v536
        %v651 = vpop.f32.mrf.mxu0
        %v652 = vadd.f32 %v521, %v651
        %653 = vmatmul.f32.gmra.mxu0 %v539
        %v654 = vpop.f32.mrf.mxu0
        %v655 = vadd.f32 %v526, %v654
        %656 = vdwg.mxu0
        %s657 = scalar_lea.vmem %s1, 32
        %v658 = vld [vmem:[%s657] sm:$0xff]
        %v659 = vld [vmem:[%s657 + $0x8] sm:$0xff]
        %v660 = vld [vmem:[%s657 + $0x10] sm:$0xff]
        %v661 = vld [vmem:[%s657 + $0x18] sm:$0xff]
        %s662 = scalar_lea.vmem %s2, 32
        %v663 = vld [vmem:[%s662] sm:$0xff]
        %v664 = vld [vmem:[%s662 + $0x8] sm:$0xff]
        %v665 = vld [vmem:[%s662 + $0x10] sm:$0xff]
        %v666 = vld [vmem:[%s662 + $0x18] sm:$0xff]
        %668 = vset.pattern.permute.xlu0 0
        %669 = vperm.xlu0 %668, %v663
        %v670 = vpop.permute.xlu0 %669
        %673 = vset.pattern.permute.xlu0 0
        %674 = vperm.xlu0 %673, %v664
        %v675 = vpop.permute.xlu0 %674
        %678 = vset.pattern.permute.xlu0 0
        %679 = vperm.xlu0 %678, %v665
        %v680 = vpop.permute.xlu0 %679
        %683 = vset.pattern.permute.xlu0 0
        %684 = vperm.xlu0 %683, %v666
        %v685 = vpop.permute.xlu0 %684
        %v688 = vsel %vm307, %v658, 0
        %v691 = vsel %vm307, %v659, 0
        %v694 = vsel %vm307, %v660, 0
        %v697 = vsel %vm307, %v661, 0
        %699 = vmatpush.msra.mxu0 0.0
        %700 = vmatpush.msra.mxu0 0.0
        %701 = vmatpush.msra.mxu0 0.0
        %702 = vmatpush.msra.mxu0 0.0
        %703 = vmatpush.msra.mxu0 0.0
        %704 = vmatpush.msra.mxu0 0.0
        %705 = vmatpush.msra.mxu0 0.0
        %706 = vmatpush.msra.mxu0 0.0
        %707 = vmatpush.msra.mxu0 0.0
        %708 = vmatpush.msra.mxu0 0.0
        %709 = vmatpush.msra.mxu0 0.0
        %710 = vmatpush.msra.mxu0 0.0
        %711 = vmatpush.msra.mxu0 %v568
        %712 = vmatpush.msra.mxu0 %v565
        %713 = vmatpush.msra.mxu0 %v562
        %714 = vmatpush.msra.mxu0 %v559
        %715 = vmatmul.f32.gmra.mxu0 %v688
        %v716 = vpop.f32.mrf.mxu0
        %v717 = vadd.f32 %v670, %v716
        %718 = vmatmul.f32.gmra.mxu0 %v691
        %v719 = vpop.f32.mrf.mxu0
        %v720 = vadd.f32 %v675, %v719
        %721 = vmatmul.f32.gmra.mxu0 %v694
        %v722 = vpop.f32.mrf.mxu0
        %v723 = vadd.f32 %v680, %v722
        %724 = vmatmul.f32.gmra.mxu0 %v697
        %v725 = vpop.f32.mrf.mxu0
        %v726 = vadd.f32 %v685, %v725
        %727 = vdwg.mxu0
        %728 = vmatpush.msra.mxu0 0.0
        %729 = vmatpush.msra.mxu0 0.0
        %730 = vmatpush.msra.mxu0 0.0
        %731 = vmatpush.msra.mxu0 0.0
        %732 = vmatpush.msra.mxu0 0.0
        %733 = vmatpush.msra.mxu0 0.0
        %734 = vmatpush.msra.mxu0 0.0
        %735 = vmatpush.msra.mxu0 0.0
        %736 = vmatpush.msra.mxu0 0.0
        %737 = vmatpush.msra.mxu0 0.0
        %738 = vmatpush.msra.mxu0 0.0
        %739 = vmatpush.msra.mxu0 0.0
        %740 = vmatpush.msra.mxu0 %v597
        %741 = vmatpush.msra.mxu0 %v594
        %742 = vmatpush.msra.mxu0 %v591
        %743 = vmatpush.msra.mxu0 %v588
        %744 = vmatmul.f32.gmra.mxu0 %v688
        %v745 = vpop.f32.mrf.mxu0
        %v746 = vadd.f32 %v670, %v745
        %747 = vmatmul.f32.gmra.mxu0 %v691
        %v748 = vpop.f32.mrf.mxu0
        %v749 = vadd.f32 %v675, %v748
        %750 = vmatmul.f32.gmra.mxu0 %v694
        %v751 = vpop.f32.mrf.mxu0
        %v752 = vadd.f32 %v680, %v751
        %753 = vmatmul.f32.gmra.mxu0 %v697
        %v754 = vpop.f32.mrf.mxu0
        %v755 = vadd.f32 %v685, %v754
        %756 = vdwg.mxu0
        %757 = vmatpush.msra.mxu0 0.0
        %758 = vmatpush.msra.mxu0 0.0
        %759 = vmatpush.msra.mxu0 0.0
        %760 = vmatpush.msra.mxu0 0.0
        %761 = vmatpush.msra.mxu0 0.0
        %762 = vmatpush.msra.mxu0 0.0
        %763 = vmatpush.msra.mxu0 0.0
        %764 = vmatpush.msra.mxu0 0.0
        %765 = vmatpush.msra.mxu0 0.0
        %766 = vmatpush.msra.mxu0 0.0
        %767 = vmatpush.msra.mxu0 0.0
        %768 = vmatpush.msra.mxu0 0.0
        %769 = vmatpush.msra.mxu0 %v626
        %770 = vmatpush.msra.mxu0 %v623
        %771 = vmatpush.msra.mxu0 %v620
        %772 = vmatpush.msra.mxu0 %v617
        %773 = vmatmul.f32.gmra.mxu0 %v688
        %v774 = vpop.f32.mrf.mxu0
        %v775 = vadd.f32 %v670, %v774
        %776 = vmatmul.f32.gmra.mxu0 %v691
        %v777 = vpop.f32.mrf.mxu0
        %v778 = vadd.f32 %v675, %v777
        %779 = vmatmul.f32.gmra.mxu0 %v694
        %v780 = vpop.f32.mrf.mxu0
        %v781 = vadd.f32 %v680, %v780
        %782 = vmatmul.f32.gmra.mxu0 %v697
        %v783 = vpop.f32.mrf.mxu0
        %v784 = vadd.f32 %v685, %v783
        %785 = vdwg.mxu0
        %786 = vmatpush.msra.mxu0 0.0
        %787 = vmatpush.msra.mxu0 0.0
        %788 = vmatpush.msra.mxu0 0.0
        %789 = vmatpush.msra.mxu0 0.0
        %790 = vmatpush.msra.mxu0 0.0
        %791 = vmatpush.msra.mxu0 0.0
        %792 = vmatpush.msra.mxu0 0.0
        %793 = vmatpush.msra.mxu0 0.0
        %794 = vmatpush.msra.mxu0 0.0
        %795 = vmatpush.msra.mxu0 0.0
        %796 = vmatpush.msra.mxu0 0.0
        %797 = vmatpush.msra.mxu0 0.0
        %798 = vmatpush.msra.mxu0 %v655
        %799 = vmatpush.msra.mxu0 %v652
        %800 = vmatpush.msra.mxu0 %v649
        %801 = vmatpush.msra.mxu0 %v646
        %802 = vmatmul.f32.gmra.mxu0 %v688
        %v803 = vpop.f32.mrf.mxu0
        %v804 = vadd.f32 %v670, %v803
        %805 = vmatmul.f32.gmra.mxu0 %v691
        %v806 = vpop.f32.mrf.mxu0
        %v807 = vadd.f32 %v675, %v806
        %808 = vmatmul.f32.gmra.mxu0 %v694
        %v809 = vpop.f32.mrf.mxu0
        %v810 = vadd.f32 %v680, %v809
        %811 = vmatmul.f32.gmra.mxu0 %v697
        %v812 = vpop.f32.mrf.mxu0
        %v813 = vadd.f32 %v685, %v812
        %814 = vdwg.mxu0
        %v815 = vmax.f32 %v717, 0.0
        %v816 = vmax.f32 %v746, 0.0
        %v817 = vmax.f32 %v775, 0.0
        %v818 = vmax.f32 %v804, 0.0
        %v819 = vmax.f32 %v720, 0.0
        %v820 = vmax.f32 %v749, 0.0
        %v821 = vmax.f32 %v778, 0.0
        %v822 = vmax.f32 %v807, 0.0
        %v823 = vmax.f32 %v723, 0.0
        %v824 = vmax.f32 %v752, 0.0
        %v825 = vmax.f32 %v781, 0.0
        %v826 = vmax.f32 %v810, 0.0
        %v827 = vmax.f32 %v726, 0.0
        %v828 = vmax.f32 %v755, 0.0
        %v829 = vmax.f32 %v784, 0.0
        %v830 = vmax.f32 %v813, 0.0
        %831 = vst [vmem:[#allocation2 + $0x100] sm:$0xff] %v815
        %832 = vst [vmem:[#allocation2 + $0x108] sm:$0xff] %v816
        %833 = vst [vmem:[#allocation2 + $0x110] sm:$0xff] %v817
        %834 = vst [vmem:[#allocation2 + $0x118] sm:$0xff] %v818
        %835 = vst [vmem:[#allocation2 + $0x120] sm:$0xff] %v819
        %836 = vst [vmem:[#allocation2 + $0x128] sm:$0xff] %v820
        %837 = vst [vmem:[#allocation2 + $0x130] sm:$0xff] %v821
        %838 = vst [vmem:[#allocation2 + $0x138] sm:$0xff] %v822
        %839 = vst [vmem:[#allocation2 + $0x140] sm:$0xff] %v823
        %840 = vst [vmem:[#allocation2 + $0x148] sm:$0xff] %v824
        %841 = vst [vmem:[#allocation2 + $0x150] sm:$0xff] %v825
        %842 = vst [vmem:[#allocation2 + $0x158] sm:$0xff] %v826
        %843 = vst [vmem:[#allocation2 + $0x160] sm:$0xff] %v827
        %844 = vst [vmem:[#allocation2 + $0x168] sm:$0xff] %v828
        %845 = vst [vmem:[#allocation2 + $0x170] sm:$0xff] %v829
        %846 = vst [vmem:[#allocation2 + $0x178] sm:$0xff] %v830
        %s847 = scalar_lea.vmem %s3, 32
        %v848 = vld [vmem:[%s847] sm:$0xff]
        %v849 = vld [vmem:[%s847 + $0x8] sm:$0xff]
        %v850 = vld [vmem:[%s847 + $0x10] sm:$0xff]
        %v851 = vld [vmem:[%s847 + $0x18] sm:$0xff]
        %v852 = vld [vmem:[#allocation2] sm:$0xff]
        %v853 = vld [vmem:[#allocation2 + $0x8] sm:$0xff]
        %v854 = vld [vmem:[#allocation2 + $0x10] sm:$0xff]
        %v855 = vld [vmem:[#allocation2 + $0x18] sm:$0xff]
        %v856 = vld [vmem:[#allocation2 + $0x20] sm:$0xff]
        %v857 = vld [vmem:[#allocation2 + $0x28] sm:$0xff]
        %v858 = vld [vmem:[#allocation2 + $0x30] sm:$0xff]
        %v859 = vld [vmem:[#allocation2 + $0x38] sm:$0xff]
        %v860 = vld [vmem:[#allocation2 + $0x40] sm:$0xff]
        %v861 = vld [vmem:[#allocation2 + $0x48] sm:$0xff]
        %v862 = vld [vmem:[#allocation2 + $0x50] sm:$0xff]
        %v863 = vld [vmem:[#allocation2 + $0x58] sm:$0xff]
        %v864 = vld [vmem:[#allocation2 + $0x60] sm:$0xff]
        %v865 = vld [vmem:[#allocation2 + $0x68] sm:$0xff]
        %v866 = vld [vmem:[#allocation2 + $0x70] sm:$0xff]
        %v867 = vld [vmem:[#allocation2 + $0x78] sm:$0xff]
        %v868 = vld [vmem:[#allocation2 + $0x80] sm:$0xff]
        %v869 = vld [vmem:[#allocation2 + $0x88] sm:$0xff]
        %v870 = vld [vmem:[#allocation2 + $0x90] sm:$0xff]
        %v871 = vld [vmem:[#allocation2 + $0x98] sm:$0xff]
        %v872 = vld [vmem:[#allocation2 + $0xa0] sm:$0xff]
        %v873 = vld [vmem:[#allocation2 + $0xa8] sm:$0xff]
        %v874 = vld [vmem:[#allocation2 + $0xb0] sm:$0xff]
        %v875 = vld [vmem:[#allocation2 + $0xb8] sm:$0xff]
        %v876 = vld [vmem:[#allocation2 + $0xc0] sm:$0xff]
        %v877 = vld [vmem:[#allocation2 + $0xc8] sm:$0xff]
        %v878 = vld [vmem:[#allocation2 + $0xd0] sm:$0xff]
        %v879 = vld [vmem:[#allocation2 + $0xd8] sm:$0xff]
        %v880 = vld [vmem:[#allocation2 + $0xe0] sm:$0xff]
        %v881 = vld [vmem:[#allocation2 + $0xe8] sm:$0xff]
        %v882 = vld [vmem:[#allocation2 + $0xf0] sm:$0xff]
        %v883 = vld [vmem:[#allocation2 + $0xf8] sm:$0xff]
        %v884 = vld [vmem:[#allocation2 + $0x100] sm:$0xff]
        %v885 = vld [vmem:[#allocation2 + $0x108] sm:$0xff]
        %v886 = vld [vmem:[#allocation2 + $0x110] sm:$0xff]
        %v887 = vld [vmem:[#allocation2 + $0x118] sm:$0xff]
        %v888 = vld [vmem:[#allocation2 + $0x120] sm:$0xff]
        %v889 = vld [vmem:[#allocation2 + $0x128] sm:$0xff]
        %v890 = vld [vmem:[#allocation2 + $0x130] sm:$0xff]
        %v891 = vld [vmem:[#allocation2 + $0x138] sm:$0xff]
        %v892 = vld [vmem:[#allocation2 + $0x140] sm:$0xff]
        %v893 = vld [vmem:[#allocation2 + $0x148] sm:$0xff]
        %v894 = vld [vmem:[#allocation2 + $0x150] sm:$0xff]
        %v895 = vld [vmem:[#allocation2 + $0x158] sm:$0xff]
        %v896 = vld [vmem:[#allocation2 + $0x160] sm:$0xff]
        %v897 = vld [vmem:[#allocation2 + $0x168] sm:$0xff]
        %v898 = vld [vmem:[#allocation2 + $0x170] sm:$0xff]
        %v899 = vld [vmem:[#allocation2 + $0x178] sm:$0xff]
        %s900 = scalar_lea.vmem %s4, 32
        %v901 = vld [vmem:[%s900] sm:$0xff]
        %v902 = vld [vmem:[%s900 + $0x8] sm:$0xff]
        %v903 = vld [vmem:[%s900 + $0x10] sm:$0xff]
        %v904 = vld [vmem:[%s900 + $0x18] sm:$0xff]
        %906 = vset.pattern.permute.xlu0 0
        %907 = vperm.xlu0 %906, %v901
        %v908 = vpop.permute.xlu0 %907
        %911 = vset.pattern.permute.xlu0 0
        %912 = vperm.xlu0 %911, %v902
        %v913 = vpop.permute.xlu0 %912
        %916 = vset.pattern.permute.xlu0 0
        %917 = vperm.xlu0 %916, %v903
        %v918 = vpop.permute.xlu0 %917
        %921 = vset.pattern.permute.xlu0 0
        %922 = vperm.xlu0 %921, %v904
        %v923 = vpop.permute.xlu0 %922
        %vm925 = vcmask 785408
        %v927 = vsel %vm925, %v848, 0
        %v930 = vsel %vm925, %v849, 0
        %v933 = vsel %vm925, %v850, 0
        %v936 = vsel %vm925, %v851, 0
        %938 = vmatpush.msra.mxu0 0.0
        %939 = vmatpush.msra.mxu0 0.0
        %940 = vmatpush.msra.mxu0 0.0
        %941 = vmatpush.msra.mxu0 0.0
        %942 = vmatpush.msra.mxu0 %v896
        %943 = vmatpush.msra.mxu0 %v892
        %944 = vmatpush.msra.mxu0 %v888
        %945 = vmatpush.msra.mxu0 %v884
        %946 = vmatpush.msra.mxu0 %v880
        %947 = vmatpush.msra.mxu0 %v876
        %948 = vmatpush.msra.mxu0 %v872
        %949 = vmatpush.msra.mxu0 %v868
        %950 = vmatpush.msra.mxu0 %v864
        %951 = vmatpush.msra.mxu0 %v860
        %952 = vmatpush.msra.mxu0 %v856
        %953 = vmatpush.msra.mxu0 %v852
        %954 = vmatmul.f32.gmra.mxu0 %v927
        %v955 = vpop.f32.mrf.mxu0
        %v956 = vadd.f32 %v908, %v955
        %957 = vmatmul.f32.gmra.mxu0 %v930
        %v958 = vpop.f32.mrf.mxu0
        %v959 = vadd.f32 %v913, %v958
        %960 = vmatmul.f32.gmra.mxu0 %v933
        %v961 = vpop.f32.mrf.mxu0
        %v962 = vadd.f32 %v918, %v961
        %963 = vmatmul.f32.gmra.mxu0 %v936
        %v964 = vpop.f32.mrf.mxu0
        %v965 = vadd.f32 %v923, %v964
        %966 = vdwg.mxu0
        %967 = vmatpush.msra.mxu0 0.0
        %968 = vmatpush.msra.mxu0 0.0
        %969 = vmatpush.msra.mxu0 0.0
        %970 = vmatpush.msra.mxu0 0.0
        %971 = vmatpush.msra.mxu0 %v897
        %972 = vmatpush.msra.mxu0 %v893
        %973 = vmatpush.msra.mxu0 %v889
        %974 = vmatpush.msra.mxu0 %v885
        %975 = vmatpush.msra.mxu0 %v881
        %976 = vmatpush.msra.mxu0 %v877
        %977 = vmatpush.msra.mxu0 %v873
        %978 = vmatpush.msra.mxu0 %v869
        %979 = vmatpush.msra.mxu0 %v865
        %980 = vmatpush.msra.mxu0 %v861
        %981 = vmatpush.msra.mxu0 %v857
        %982 = vmatpush.msra.mxu0 %v853
        %983 = vmatmul.f32.gmra.mxu0 %v927
        %v984 = vpop.f32.mrf.mxu0
        %v985 = vadd.f32 %v908, %v984
        %986 = vmatmul.f32.gmra.mxu0 %v930
        %v987 = vpop.f32.mrf.mxu0
        %v988 = vadd.f32 %v913, %v987
        %989 = vmatmul.f32.gmra.mxu0 %v933
        %v990 = vpop.f32.mrf.mxu0
        %v991 = vadd.f32 %v918, %v990
        %992 = vmatmul.f32.gmra.mxu0 %v936
        %v993 = vpop.f32.mrf.mxu0
        %v994 = vadd.f32 %v923, %v993
        %995 = vdwg.mxu0
        %996 = vmatpush.msra.mxu0 0.0
        %997 = vmatpush.msra.mxu0 0.0
        %998 = vmatpush.msra.mxu0 0.0
        %999 = vmatpush.msra.mxu0 0.0
        %1000 = vmatpush.msra.mxu0 %v898
        %1001 = vmatpush.msra.mxu0 %v894
        %1002 = vmatpush.msra.mxu0 %v890
        %1003 = vmatpush.msra.mxu0 %v886
        %1004 = vmatpush.msra.mxu0 %v882
        %1005 = vmatpush.msra.mxu0 %v878
        %1006 = vmatpush.msra.mxu0 %v874
        %1007 = vmatpush.msra.mxu0 %v870
        %1008 = vmatpush.msra.mxu0 %v866
        %1009 = vmatpush.msra.mxu0 %v862
        %1010 = vmatpush.msra.mxu0 %v858
        %1011 = vmatpush.msra.mxu0 %v854
        %1012 = vmatmul.f32.gmra.mxu0 %v927
        %v1013 = vpop.f32.mrf.mxu0
        %v1014 = vadd.f32 %v908, %v1013
        %1015 = vmatmul.f32.gmra.mxu0 %v930
        %v1016 = vpop.f32.mrf.mxu0
        %v1017 = vadd.f32 %v913, %v1016
        %1018 = vmatmul.f32.gmra.mxu0 %v933
        %v1019 = vpop.f32.mrf.mxu0
        %v1020 = vadd.f32 %v918, %v1019
        %1021 = vmatmul.f32.gmra.mxu0 %v936
        %v1022 = vpop.f32.mrf.mxu0
        %v1023 = vadd.f32 %v923, %v1022
        %1024 = vdwg.mxu0
        %1025 = vmatpush.msra.mxu0 0.0
        %1026 = vmatpush.msra.mxu0 0.0
        %1027 = vmatpush.msra.mxu0 0.0
        %1028 = vmatpush.msra.mxu0 0.0
        %1029 = vmatpush.msra.mxu0 %v899
        %1030 = vmatpush.msra.mxu0 %v895
        %1031 = vmatpush.msra.mxu0 %v891
        %1032 = vmatpush.msra.mxu0 %v887
        %1033 = vmatpush.msra.mxu0 %v883
        %1034 = vmatpush.msra.mxu0 %v879
        %1035 = vmatpush.msra.mxu0 %v875
        %1036 = vmatpush.msra.mxu0 %v871
        %1037 = vmatpush.msra.mxu0 %v867
        %1038 = vmatpush.msra.mxu0 %v863
        %1039 = vmatpush.msra.mxu0 %v859
        %1040 = vmatpush.msra.mxu0 %v855
        %1041 = vmatmul.f32.gmra.mxu0 %v927
        %v1042 = vpop.f32.mrf.mxu0
        %v1043 = vadd.f32 %v908, %v1042
        %1044 = vmatmul.f32.gmra.mxu0 %v930
        %v1045 = vpop.f32.mrf.mxu0
        %v1046 = vadd.f32 %v913, %v1045
        %1047 = vmatmul.f32.gmra.mxu0 %v933
        %v1048 = vpop.f32.mrf.mxu0
        %v1049 = vadd.f32 %v918, %v1048
        %1050 = vmatmul.f32.gmra.mxu0 %v936
        %v1051 = vpop.f32.mrf.mxu0
        %v1052 = vadd.f32 %v923, %v1051
        %1053 = vdwg.mxu0
        %s1054 = scalar_lea.vmem %s1, 64
        %v1055 = vld [vmem:[%s1054] sm:$0xff]
        %v1056 = vld [vmem:[%s1054 + $0x8] sm:$0xff]
        %v1057 = vld [vmem:[%s1054 + $0x10] sm:$0xff]
        %v1058 = vld [vmem:[%s1054 + $0x18] sm:$0xff]
        %s1059 = scalar_lea.vmem %s2, 64
        %v1060 = vld [vmem:[%s1059] sm:$0xff]
        %v1061 = vld [vmem:[%s1059 + $0x8] sm:$0xff]
        %v1062 = vld [vmem:[%s1059 + $0x10] sm:$0xff]
        %v1063 = vld [vmem:[%s1059 + $0x18] sm:$0xff]
        %1065 = vset.pattern.permute.xlu0 0
        %1066 = vperm.xlu0 %1065, %v1060
        %v1067 = vpop.permute.xlu0 %1066
        %1070 = vset.pattern.permute.xlu0 0
        %1071 = vperm.xlu0 %1070, %v1061
        %v1072 = vpop.permute.xlu0 %1071
        %1075 = vset.pattern.permute.xlu0 0
        %1076 = vperm.xlu0 %1075, %v1062
        %v1077 = vpop.permute.xlu0 %1076
        %1080 = vset.pattern.permute.xlu0 0
        %1081 = vperm.xlu0 %1080, %v1063
        %v1082 = vpop.permute.xlu0 %1081
        %v1085 = vsel %vm307, %v1055, 0
        %v1088 = vsel %vm307, %v1056, 0
        %v1091 = vsel %vm307, %v1057, 0
        %v1094 = vsel %vm307, %v1058, 0
        %1096 = vmatpush.msra.mxu0 0.0
        %1097 = vmatpush.msra.mxu0 0.0
        %1098 = vmatpush.msra.mxu0 0.0
        %1099 = vmatpush.msra.mxu0 0.0
        %1100 = vmatpush.msra.mxu0 0.0
        %1101 = vmatpush.msra.mxu0 0.0
        %1102 = vmatpush.msra.mxu0 0.0
        %1103 = vmatpush.msra.mxu0 0.0
        %1104 = vmatpush.msra.mxu0 0.0
        %1105 = vmatpush.msra.mxu0 0.0
        %1106 = vmatpush.msra.mxu0 0.0
        %1107 = vmatpush.msra.mxu0 0.0
        %1108 = vmatpush.msra.mxu0 %v965
        %1109 = vmatpush.msra.mxu0 %v962
        %1110 = vmatpush.msra.mxu0 %v959
        %1111 = vmatpush.msra.mxu0 %v956
        %1112 = vmatmul.f32.gmra.mxu0 %v1085
        %v1113 = vpop.f32.mrf.mxu0
        %v1114 = vadd.f32 %v1067, %v1113
        %1115 = vmatmul.f32.gmra.mxu0 %v1088
        %v1116 = vpop.f32.mrf.mxu0
        %v1117 = vadd.f32 %v1072, %v1116
        %1118 = vmatmul.f32.gmra.mxu0 %v1091
        %v1119 = vpop.f32.mrf.mxu0
        %v1120 = vadd.f32 %v1077, %v1119
        %1121 = vmatmul.f32.gmra.mxu0 %v1094
        %v1122 = vpop.f32.mrf.mxu0
        %v1123 = vadd.f32 %v1082, %v1122
        %1124 = vdwg.mxu0
        %1125 = vmatpush.msra.mxu0 0.0
        %1126 = vmatpush.msra.mxu0 0.0
        %1127 = vmatpush.msra.mxu0 0.0
        %1128 = vmatpush.msra.mxu0 0.0
        %1129 = vmatpush.msra.mxu0 0.0
        %1130 = vmatpush.msra.mxu0 0.0
        %1131 = vmatpush.msra.mxu0 0.0
        %1132 = vmatpush.msra.mxu0 0.0
        %1133 = vmatpush.msra.mxu0 0.0
        %1134 = vmatpush.msra.mxu0 0.0
        %1135 = vmatpush.msra.mxu0 0.0
        %1136 = vmatpush.msra.mxu0 0.0
        %1137 = vmatpush.msra.mxu0 %v994
        %1138 = vmatpush.msra.mxu0 %v991
        %1139 = vmatpush.msra.mxu0 %v988
        %1140 = vmatpush.msra.mxu0 %v985
        %1141 = vmatmul.f32.gmra.mxu0 %v1085
        %v1142 = vpop.f32.mrf.mxu0
        %v1143 = vadd.f32 %v1067, %v1142
        %1144 = vmatmul.f32.gmra.mxu0 %v1088
        %v1145 = vpop.f32.mrf.mxu0
        %v1146 = vadd.f32 %v1072, %v1145
        %1147 = vmatmul.f32.gmra.mxu0 %v1091
        %v1148 = vpop.f32.mrf.mxu0
        %v1149 = vadd.f32 %v1077, %v1148
        %1150 = vmatmul.f32.gmra.mxu0 %v1094
        %v1151 = vpop.f32.mrf.mxu0
        %v1152 = vadd.f32 %v1082, %v1151
        %1153 = vdwg.mxu0
        %1154 = vmatpush.msra.mxu0 0.0
        %1155 = vmatpush.msra.mxu0 0.0
        %1156 = vmatpush.msra.mxu0 0.0
        %1157 = vmatpush.msra.mxu0 0.0
        %1158 = vmatpush.msra.mxu0 0.0
        %1159 = vmatpush.msra.mxu0 0.0
        %1160 = vmatpush.msra.mxu0 0.0
        %1161 = vmatpush.msra.mxu0 0.0
        %1162 = vmatpush.msra.mxu0 0.0
        %1163 = vmatpush.msra.mxu0 0.0
        %1164 = vmatpush.msra.mxu0 0.0
        %1165 = vmatpush.msra.mxu0 0.0
        %1166 = vmatpush.msra.mxu0 %v1023
        %1167 = vmatpush.msra.mxu0 %v1020
        %1168 = vmatpush.msra.mxu0 %v1017
        %1169 = vmatpush.msra.mxu0 %v1014
        %1170 = vmatmul.f32.gmra.mxu0 %v1085
        %v1171 = vpop.f32.mrf.mxu0
        %v1172 = vadd.f32 %v1067, %v1171
        %1173 = vmatmul.f32.gmra.mxu0 %v1088
        %v1174 = vpop.f32.mrf.mxu0
        %v1175 = vadd.f32 %v1072, %v1174
        %1176 = vmatmul.f32.gmra.mxu0 %v1091
        %v1177 = vpop.f32.mrf.mxu0
        %v1178 = vadd.f32 %v1077, %v1177
        %1179 = vmatmul.f32.gmra.mxu0 %v1094
        %v1180 = vpop.f32.mrf.mxu0
        %v1181 = vadd.f32 %v1082, %v1180
        %1182 = vdwg.mxu0
        %1183 = vmatpush.msra.mxu0 0.0
        %1184 = vmatpush.msra.mxu0 0.0
        %1185 = vmatpush.msra.mxu0 0.0
        %1186 = vmatpush.msra.mxu0 0.0
        %1187 = vmatpush.msra.mxu0 0.0
        %1188 = vmatpush.msra.mxu0 0.0
        %1189 = vmatpush.msra.mxu0 0.0
        %1190 = vmatpush.msra.mxu0 0.0
        %1191 = vmatpush.msra.mxu0 0.0
        %1192 = vmatpush.msra.mxu0 0.0
        %1193 = vmatpush.msra.mxu0 0.0
        %1194 = vmatpush.msra.mxu0 0.0
        %1195 = vmatpush.msra.mxu0 %v1052
        %1196 = vmatpush.msra.mxu0 %v1049
        %1197 = vmatpush.msra.mxu0 %v1046
        %1198 = vmatpush.msra.mxu0 %v1043
        %1199 = vmatmul.f32.gmra.mxu0 %v1085
        %v1200 = vpop.f32.mrf.mxu0
        %v1201 = vadd.f32 %v1067, %v1200
        %1202 = vmatmul.f32.gmra.mxu0 %v1088
        %v1203 = vpop.f32.mrf.mxu0
        %v1204 = vadd.f32 %v1072, %v1203
        %1205 = vmatmul.f32.gmra.mxu0 %v1091
        %v1206 = vpop.f32.mrf.mxu0
        %v1207 = vadd.f32 %v1077, %v1206
        %1208 = vmatmul.f32.gmra.mxu0 %v1094
        %v1209 = vpop.f32.mrf.mxu0
        %v1210 = vadd.f32 %v1082, %v1209
        %1211 = vdwg.mxu0
        %v1212 = vmax.f32 %v1114, 0.0
        %v1213 = vmax.f32 %v1143, 0.0
        %v1214 = vmax.f32 %v1172, 0.0
        %v1215 = vmax.f32 %v1201, 0.0
        %v1216 = vmax.f32 %v1117, 0.0
        %v1217 = vmax.f32 %v1146, 0.0
        %v1218 = vmax.f32 %v1175, 0.0
        %v1219 = vmax.f32 %v1204, 0.0
        %v1220 = vmax.f32 %v1120, 0.0
        %v1221 = vmax.f32 %v1149, 0.0
        %v1222 = vmax.f32 %v1178, 0.0
        %v1223 = vmax.f32 %v1207, 0.0
        %v1224 = vmax.f32 %v1123, 0.0
        %v1225 = vmax.f32 %v1152, 0.0
        %v1226 = vmax.f32 %v1181, 0.0
        %v1227 = vmax.f32 %v1210, 0.0
        %1228 = vst [vmem:[#allocation2 + $0x180] sm:$0xff] %v1212
        %1229 = vst [vmem:[#allocation2 + $0x188] sm:$0xff] %v1213
        %1230 = vst [vmem:[#allocation2 + $0x190] sm:$0xff] %v1214
        %1231 = vst [vmem:[#allocation2 + $0x198] sm:$0xff] %v1215
        %1232 = vst [vmem:[#allocation2 + $0x1a0] sm:$0xff] %v1216
        %1233 = vst [vmem:[#allocation2 + $0x1a8] sm:$0xff] %v1217
        %1234 = vst [vmem:[#allocation2 + $0x1b0] sm:$0xff] %v1218
        %1235 = vst [vmem:[#allocation2 + $0x1b8] sm:$0xff] %v1219
        %1236 = vst [vmem:[#allocation2 + $0x1c0] sm:$0xff] %v1220
        %1237 = vst [vmem:[#allocation2 + $0x1c8] sm:$0xff] %v1221
        %1238 = vst [vmem:[#allocation2 + $0x1d0] sm:$0xff] %v1222
        %1239 = vst [vmem:[#allocation2 + $0x1d8] sm:$0xff] %v1223
        %1240 = vst [vmem:[#allocation2 + $0x1e0] sm:$0xff] %v1224
        %1241 = vst [vmem:[#allocation2 + $0x1e8] sm:$0xff] %v1225
        %1242 = vst [vmem:[#allocation2 + $0x1f0] sm:$0xff] %v1226
        %1243 = vst [vmem:[#allocation2 + $0x1f8] sm:$0xff] %v1227
        %s1244 = scalar_lea.vmem %s3, 64
        %v1245 = vld [vmem:[%s1244] sm:$0xff]
        %v1246 = vld [vmem:[%s1244 + $0x8] sm:$0xff]
        %v1247 = vld [vmem:[%s1244 + $0x10] sm:$0xff]
        %v1248 = vld [vmem:[%s1244 + $0x18] sm:$0xff]
        %v1249 = vld [vmem:[#allocation2] sm:$0xff]
        %v1250 = vld [vmem:[#allocation2 + $0x8] sm:$0xff]
        %v1251 = vld [vmem:[#allocation2 + $0x10] sm:$0xff]
        %v1252 = vld [vmem:[#allocation2 + $0x18] sm:$0xff]
        %v1253 = vld [vmem:[#allocation2 + $0x20] sm:$0xff]
        %v1254 = vld [vmem:[#allocation2 + $0x28] sm:$0xff]
        %v1255 = vld [vmem:[#allocation2 + $0x30] sm:$0xff]
        %v1256 = vld [vmem:[#allocation2 + $0x38] sm:$0xff]
        %v1257 = vld [vmem:[#allocation2 + $0x40] sm:$0xff]
        %v1258 = vld [vmem:[#allocation2 + $0x48] sm:$0xff]
        %v1259 = vld [vmem:[#allocation2 + $0x50] sm:$0xff]
        %v1260 = vld [vmem:[#allocation2 + $0x58] sm:$0xff]
        %v1261 = vld [vmem:[#allocation2 + $0x60] sm:$0xff]
        %v1262 = vld [vmem:[#allocation2 + $0x68] sm:$0xff]
        %v1263 = vld [vmem:[#allocation2 + $0x70] sm:$0xff]
        %v1264 = vld [vmem:[#allocation2 + $0x78] sm:$0xff]
        %v1265 = vld [vmem:[#allocation2 + $0x80] sm:$0xff]
        %v1266 = vld [vmem:[#allocation2 + $0x88] sm:$0xff]
        %v1267 = vld [vmem:[#allocation2 + $0x90] sm:$0xff]
        %v1268 = vld [vmem:[#allocation2 + $0x98] sm:$0xff]
        %v1269 = vld [vmem:[#allocation2 + $0xa0] sm:$0xff]
        %v1270 = vld [vmem:[#allocation2 + $0xa8] sm:$0xff]
        %v1271 = vld [vmem:[#allocation2 + $0xb0] sm:$0xff]
        %v1272 = vld [vmem:[#allocation2 + $0xb8] sm:$0xff]
        %v1273 = vld [vmem:[#allocation2 + $0xc0] sm:$0xff]
        %v1274 = vld [vmem:[#allocation2 + $0xc8] sm:$0xff]
        %v1275 = vld [vmem:[#allocation2 + $0xd0] sm:$0xff]
        %v1276 = vld [vmem:[#allocation2 + $0xd8] sm:$0xff]
        %v1277 = vld [vmem:[#allocation2 + $0xe0] sm:$0xff]
        %v1278 = vld [vmem:[#allocation2 + $0xe8] sm:$0xff]
        %v1279 = vld [vmem:[#allocation2 + $0xf0] sm:$0xff]
        %v1280 = vld [vmem:[#allocation2 + $0xf8] sm:$0xff]
        %v1281 = vld [vmem:[#allocation2 + $0x100] sm:$0xff]
        %v1282 = vld [vmem:[#allocation2 + $0x108] sm:$0xff]
        %v1283 = vld [vmem:[#allocation2 + $0x110] sm:$0xff]
        %v1284 = vld [vmem:[#allocation2 + $0x118] sm:$0xff]
        %v1285 = vld [vmem:[#allocation2 + $0x120] sm:$0xff]
        %v1286 = vld [vmem:[#allocation2 + $0x128] sm:$0xff]
        %v1287 = vld [vmem:[#allocation2 + $0x130] sm:$0xff]
        %v1288 = vld [vmem:[#allocation2 + $0x138] sm:$0xff]
        %v1289 = vld [vmem:[#allocation2 + $0x140] sm:$0xff]
        %v1290 = vld [vmem:[#allocation2 + $0x148] sm:$0xff]
        %v1291 = vld [vmem:[#allocation2 + $0x150] sm:$0xff]
        %v1292 = vld [vmem:[#allocation2 + $0x158] sm:$0xff]
        %v1293 = vld [vmem:[#allocation2 + $0x160] sm:$0xff]
        %v1294 = vld [vmem:[#allocation2 + $0x168] sm:$0xff]
        %v1295 = vld [vmem:[#allocation2 + $0x170] sm:$0xff]
        %v1296 = vld [vmem:[#allocation2 + $0x178] sm:$0xff]
        %v1297 = vld [vmem:[#allocation2 + $0x180] sm:$0xff]
        %v1298 = vld [vmem:[#allocation2 + $0x188] sm:$0xff]
        %v1299 = vld [vmem:[#allocation2 + $0x190] sm:$0xff]
        %v1300 = vld [vmem:[#allocation2 + $0x198] sm:$0xff]
        %v1301 = vld [vmem:[#allocation2 + $0x1a0] sm:$0xff]
        %v1302 = vld [vmem:[#allocation2 + $0x1a8] sm:$0xff]
        %v1303 = vld [vmem:[#allocation2 + $0x1b0] sm:$0xff]
        %v1304 = vld [vmem:[#allocation2 + $0x1b8] sm:$0xff]
        %v1305 = vld [vmem:[#allocation2 + $0x1c0] sm:$0xff]
        %v1306 = vld [vmem:[#allocation2 + $0x1c8] sm:$0xff]
        %v1307 = vld [vmem:[#allocation2 + $0x1d0] sm:$0xff]
        %v1308 = vld [vmem:[#allocation2 + $0x1d8] sm:$0xff]
        %v1309 = vld [vmem:[#allocation2 + $0x1e0] sm:$0xff]
        %v1310 = vld [vmem:[#allocation2 + $0x1e8] sm:$0xff]
        %v1311 = vld [vmem:[#allocation2 + $0x1f0] sm:$0xff]
        %v1312 = vld [vmem:[#allocation2 + $0x1f8] sm:$0xff]
        %s1313 = scalar_lea.vmem %s4, 64
        %v1314 = vld [vmem:[%s1313] sm:$0xff]
        %v1315 = vld [vmem:[%s1313 + $0x8] sm:$0xff]
        %v1316 = vld [vmem:[%s1313 + $0x10] sm:$0xff]
        %v1317 = vld [vmem:[%s1313 + $0x18] sm:$0xff]
        %1319 = vset.pattern.permute.xlu0 0
        %1320 = vperm.xlu0 %1319, %v1314
        %v1321 = vpop.permute.xlu0 %1320
        %1324 = vset.pattern.permute.xlu0 0
        %1325 = vperm.xlu0 %1324, %v1315
        %v1326 = vpop.permute.xlu0 %1325
        %1329 = vset.pattern.permute.xlu0 0
        %1330 = vperm.xlu0 %1329, %v1316
        %v1331 = vpop.permute.xlu0 %1330
        %1334 = vset.pattern.permute.xlu0 0
        %1335 = vperm.xlu0 %1334, %v1317
        %v1336 = vpop.permute.xlu0 %1335
        %1338 = vmatpush.msra.mxu0 %v1309
        %1339 = vmatpush.msra.mxu0 %v1305
        %1340 = vmatpush.msra.mxu0 %v1301
        %1341 = vmatpush.msra.mxu0 %v1297
        %1342 = vmatpush.msra.mxu0 %v1293
        %1343 = vmatpush.msra.mxu0 %v1289
        %1344 = vmatpush.msra.mxu0 %v1285
        %1345 = vmatpush.msra.mxu0 %v1281
        %1346 = vmatpush.msra.mxu0 %v1277
        %1347 = vmatpush.msra.mxu0 %v1273
        %1348 = vmatpush.msra.mxu0 %v1269
        %1349 = vmatpush.msra.mxu0 %v1265
        %1350 = vmatpush.msra.mxu0 %v1261
        %1351 = vmatpush.msra.mxu0 %v1257
        %1352 = vmatpush.msra.mxu0 %v1253
        %1353 = vmatpush.msra.mxu0 %v1249
        %1354 = vmatmul.f32.gmra.mxu0 %v1245
        %v1355 = vpop.f32.mrf.mxu0
        %v1356 = vadd.f32 %v1321, %v1355
        %1357 = vmatmul.f32.gmra.mxu0 %v1246
        %v1358 = vpop.f32.mrf.mxu0
        %v1359 = vadd.f32 %v1326, %v1358
        %1360 = vmatmul.f32.gmra.mxu0 %v1247
        %v1361 = vpop.f32.mrf.mxu0
        %v1362 = vadd.f32 %v1331, %v1361
        %1363 = vmatmul.f32.gmra.mxu0 %v1248
        %v1364 = vpop.f32.mrf.mxu0
        %v1365 = vadd.f32 %v1336, %v1364
        %1366 = vdwg.mxu0
        %1367 = vmatpush.msra.mxu0 %v1310
        %1368 = vmatpush.msra.mxu0 %v1306
        %1369 = vmatpush.msra.mxu0 %v1302
        %1370 = vmatpush.msra.mxu0 %v1298
        %1371 = vmatpush.msra.mxu0 %v1294
        %1372 = vmatpush.msra.mxu0 %v1290
        %1373 = vmatpush.msra.mxu0 %v1286
        %1374 = vmatpush.msra.mxu0 %v1282
        %1375 = vmatpush.msra.mxu0 %v1278
        %1376 = vmatpush.msra.mxu0 %v1274
        %1377 = vmatpush.msra.mxu0 %v1270
        %1378 = vmatpush.msra.mxu0 %v1266
        %1379 = vmatpush.msra.mxu0 %v1262
        %1380 = vmatpush.msra.mxu0 %v1258
        %1381 = vmatpush.msra.mxu0 %v1254
        %1382 = vmatpush.msra.mxu0 %v1250
        %1383 = vmatmul.f32.gmra.mxu0 %v1245
        %v1384 = vpop.f32.mrf.mxu0
        %v1385 = vadd.f32 %v1321, %v1384
        %1386 = vmatmul.f32.gmra.mxu0 %v1246
        %v1387 = vpop.f32.mrf.mxu0
        %v1388 = vadd.f32 %v1326, %v1387
        %1389 = vmatmul.f32.gmra.mxu0 %v1247
        %v1390 = vpop.f32.mrf.mxu0
        %v1391 = vadd.f32 %v1331, %v1390
        %1392 = vmatmul.f32.gmra.mxu0 %v1248
        %v1393 = vpop.f32.mrf.mxu0
        %v1394 = vadd.f32 %v1336, %v1393
        %1395 = vdwg.mxu0
        %1396 = vmatpush.msra.mxu0 %v1311
        %1397 = vmatpush.msra.mxu0 %v1307
        %1398 = vmatpush.msra.mxu0 %v1303
        %1399 = vmatpush.msra.mxu0 %v1299
        %1400 = vmatpush.msra.mxu0 %v1295
        %1401 = vmatpush.msra.mxu0 %v1291
        %1402 = vmatpush.msra.mxu0 %v1287
        %1403 = vmatpush.msra.mxu0 %v1283
        %1404 = vmatpush.msra.mxu0 %v1279
        %1405 = vmatpush.msra.mxu0 %v1275
        %1406 = vmatpush.msra.mxu0 %v1271
        %1407 = vmatpush.msra.mxu0 %v1267
        %1408 = vmatpush.msra.mxu0 %v1263
        %1409 = vmatpush.msra.mxu0 %v1259
        %1410 = vmatpush.msra.mxu0 %v1255
        %1411 = vmatpush.msra.mxu0 %v1251
        %1412 = vmatmul.f32.gmra.mxu0 %v1245
        %v1413 = vpop.f32.mrf.mxu0
        %v1414 = vadd.f32 %v1321, %v1413
        %1415 = vmatmul.f32.gmra.mxu0 %v1246
        %v1416 = vpop.f32.mrf.mxu0
        %v1417 = vadd.f32 %v1326, %v1416
        %1418 = vmatmul.f32.gmra.mxu0 %v1247
        %v1419 = vpop.f32.mrf.mxu0
        %v1420 = vadd.f32 %v1331, %v1419
        %1421 = vmatmul.f32.gmra.mxu0 %v1248
        %v1422 = vpop.f32.mrf.mxu0
        %v1423 = vadd.f32 %v1336, %v1422
        %1424 = vdwg.mxu0
        %1425 = vmatpush.msra.mxu0 %v1312
        %1426 = vmatpush.msra.mxu0 %v1308
        %1427 = vmatpush.msra.mxu0 %v1304
        %1428 = vmatpush.msra.mxu0 %v1300
        %1429 = vmatpush.msra.mxu0 %v1296
        %1430 = vmatpush.msra.mxu0 %v1292
        %1431 = vmatpush.msra.mxu0 %v1288
        %1432 = vmatpush.msra.mxu0 %v1284
        %1433 = vmatpush.msra.mxu0 %v1280
        %1434 = vmatpush.msra.mxu0 %v1276
        %1435 = vmatpush.msra.mxu0 %v1272
        %1436 = vmatpush.msra.mxu0 %v1268
        %1437 = vmatpush.msra.mxu0 %v1264
        %1438 = vmatpush.msra.mxu0 %v1260
        %1439 = vmatpush.msra.mxu0 %v1256
        %1440 = vmatpush.msra.mxu0 %v1252
        %1441 = vmatmul.f32.gmra.mxu0 %v1245
        %v1442 = vpop.f32.mrf.mxu0
        %v1443 = vadd.f32 %v1321, %v1442
        %1444 = vmatmul.f32.gmra.mxu0 %v1246
        %v1445 = vpop.f32.mrf.mxu0
        %v1446 = vadd.f32 %v1326, %v1445
        %1447 = vmatmul.f32.gmra.mxu0 %v1247
        %v1448 = vpop.f32.mrf.mxu0
        %v1449 = vadd.f32 %v1331, %v1448
        %1450 = vmatmul.f32.gmra.mxu0 %v1248
        %v1451 = vpop.f32.mrf.mxu0
        %v1452 = vadd.f32 %v1336, %v1451
        %1453 = vdwg.mxu0
        %1454 = vst [vmem:[%s244] sm:$0xff] %v1356
        %1455 = vst [vmem:[%s244 + $0x8] sm:$0xff] %v1385
        %1456 = vst [vmem:[%s244 + $0x10] sm:$0xff] %v1414
        %1457 = vst [vmem:[%s244 + $0x18] sm:$0xff] %v1443
        %1458 = vst [vmem:[%s244 + $0x20] sm:$0xff] %v1359
        %1459 = vst [vmem:[%s244 + $0x28] sm:$0xff] %v1388
        %1460 = vst [vmem:[%s244 + $0x30] sm:$0xff] %v1417
        %1461 = vst [vmem:[%s244 + $0x38] sm:$0xff] %v1446
        %1462 = vst [vmem:[%s244 + $0x40] sm:$0xff] %v1362
        %1463 = vst [vmem:[%s244 + $0x48] sm:$0xff] %v1391
        %1464 = vst [vmem:[%s244 + $0x50] sm:$0xff] %v1420
        %1465 = vst [vmem:[%s244 + $0x58] sm:$0xff] %v1449
        %1466 = vst [vmem:[%s244 + $0x60] sm:$0xff] %v1365
        %1467 = vst [vmem:[%s244 + $0x68] sm:$0xff] %v1394
        %1468 = vst [vmem:[%s244 + $0x70] sm:$0xff] %v1423
        %1469 = vst [vmem:[%s244 + $0x78] sm:$0xff] %v1452
        %s1470 = sand.u32 %s140, 1
        %s1471 = scalar_lea.sflag [#allocation5], %s1470
        %s1472 = sand.u32 %s140, 1
        %s1473 = smul.addr %s1472, 128
        %s1474 = scalar_lea.vmem [#allocation6], %s1473
        // Predicated region
        $region45: #{tpu_custom_call.1} parent=39 // pred_check
          %p1475 = pneg %p150
        $region46: #{tpu_custom_call.1} parent=39 // pred_check_branch
          %1477 = sbr.rel (%p1475) target = $region48
        $region47: #{tpu_custom_call.1} parent=39 // pred_region
          %s1478 = smul.u32 4, %s22
          %1480 = vsyncadd %s1471, 0
          %s1481 = smul.addr %s1478, 8
          %s1482 = scalar_lea.hbm %s5, %s1481
          %s1483 = sshll.u32 %s1474, 4
          %s1484 = int_to_ptr.vmem [resolvable:$true] %s1483
          %s1485 = sshll.u32 %s1482, 4
          %s1486 = int_to_ptr.hbm [resolvable:$true] %s1485
          %1491 = dma.vmem_to_hbm [thread:$0]  %s1484, 2048, %s1486, %s1471, 512, 1024, 32
        $region48: #{tpu_custom_call.1} parent=39 // pred_fallthru
          _
      $region40: #{tpu_custom_call.1} parent=5 // pred_fallthru
        _
      %p1492 = scmp.le.s32.totalorder 2, %s17
      // Predicated region
      $region49: #{tpu_custom_call.1} parent=5 // pred_check
        %p1493 = pneg %p1492
      $region50: #{tpu_custom_call.1} parent=5 // pred_check_branch
        %1495 = sbr.rel (%p1493) target = $region52
      $region51: #{tpu_custom_call.1} parent=5 // pred_region
        %s1496 = ssub.s32 %s17, 2
        // Predicated region
        $region53: #{tpu_custom_call.1} parent=51 // pred_check
          %p1497 = pneg %p156
        $region54: #{tpu_custom_call.1} parent=51 // pred_check_branch
          %1499 = sbr.rel (%p1497) target = $region56
        $region55: #{tpu_custom_call.1} parent=51 // pred_region
          %s1500 = sand.u32 %s141, 1
          %s1501 = scalar_lea.sflag [#allocation5], %s1500
          %s1502 = sand.u32 %s141, 1
          %s1503 = smul.addr %s1502, 128
          %s1504 = scalar_lea.vmem [#allocation6], %s1503
          %1506 = dma.done %s1501, 2048
        $region56: #{tpu_custom_call.1} parent=51 // pred_fallthru
          _
      $region52: #{tpu_custom_call.1} parent=5 // pred_fallthru
        _
    $region6: #{tpu_custom_call.1} parent=1 // loop_footer
      %s21 = sadd.s32 1, %s17
    $region7: #{tpu_custom_call.1} parent=1 // loop_footer_branch
      %16 = sbr.rel target = $region3
    $region8: #{tpu_custom_call.1} parent=1 // loop_exit
      _
    %1507 = vsyncpa [#allocation4], 1
    %s1508 = scalar_lea.sflag [#allocation4], 1
    %1509 = vsyncpa %s1508, 1
    %1510 = vsyncpa [#allocation5], 1
    %s1511 = scalar_lea.sflag [#allocation5], 1
    %1512 = vsyncpa %s1511, 1

</llo_original>
